<compile_context>
chip_gen: v5e
topology: v5e:2x2
jax: 0.10.0
libtpu: 0.0.40
codegen_flags: <defaults>
</compile_context>

<pallas_src>
import functools
import math

import jax
import jax.numpy as jnp
from jax import lax
from jax.experimental import pallas as pl
from jax.experimental.pallas import tpu as pltpu

# TODO(synk): RMSNorm class definition is not provided in the reference; assuming
#             y = x * rsqrt(mean(x^2) + 1e-6), affine=False.
_RMS_EPS = 1e-6
# MXU operand dtype (all accumulation / softmax / norm math stays in f32).
_COMPUTE_DTYPE = jnp.bfloat16


def _rmsnorm(x, eps=_RMS_EPS):
    return x * lax.rsqrt(jnp.mean(x * x, axis=-1, keepdims=True) + eps)


# -------------------- fused (attention + MLP) decoder-pair kernel --------------------
def _decoder_pair_kernel(x_ref, cos_ref, sin_ref, qkvw_ref, ow_ref, w1_ref, w2_ref,
                         out_ref, *, nheads, head_dim):
    T = x_ref.shape[1]
    H, Dh = nheads, head_dim
    F = Dh // 2
    cdt = _COMPUTE_DTYPE

    x = x_ref[0].astype(jnp.float32)          # (T, D) residual stream (f32)
    cos_t = cos_ref[0].astype(jnp.float32)    # (T, F)  hoisted rotary angles
    sin_t = sin_ref[0].astype(jnp.float32)    # (T, F)

    # ------------------------------ attention sublayer ------------------------------
    xn = _rmsnorm(x).astype(cdt)
    # pre-transposed fused QKV weight (D, 3D): no in-kernel transpose.
    qkv = jnp.dot(xn, qkvw_ref[...], preferred_element_type=jnp.float32)   # (T, 3*H*Dh)

    def gather_heads(base):
        # stack per-head lane slices along a new leading (batch) axis -> (H, T, Dh)
        return jnp.stack(
            [qkv[:, (base + h) * Dh:(base + h + 1) * Dh] for h in range(H)], axis=0)

    q = gather_heads(0)          # (H, T, Dh)
    k = gather_heads(H)
    v = gather_heads(2 * H)

    def rope(z):
        # z: (H, T, Dh) f32 — half-split multi-position rotary.
        zx = z[..., :F]
        zy = z[..., F:]
        c = cos_t[None, :, :]
        s = sin_t[None, :, :]
        return jnp.concatenate([zx * c - zy * s, zx * s + zy * c], axis=-1)

    q = rope(_rmsnorm(q)).astype(cdt)     # qk-norm then rotary, then bf16 for the MXU
    k = rope(_rmsnorm(k)).astype(cdt)
    v = v.astype(cdt)

    # batched-over-heads attention (canonical leading-batch einsums).
    s = jnp.einsum('hqd,hkd->hqk', q, k, preferred_element_type=jnp.float32)
    s = s * (1.0 / math.sqrt(Dh))
    row = lax.broadcasted_iota(jnp.int32, (T, T), 0)
    col = lax.broadcasted_iota(jnp.int32, (T, T), 1)
    s = jnp.where((col <= row)[None, :, :], s, -1e30)          # causal mask (f32 scores)
    s = s - jnp.max(s, axis=-1, keepdims=True)
    p = jnp.exp(s)
    p = p * pl.reciprocal(jnp.sum(p, axis=-1, keepdims=True), approx=True)
    o = jnp.einsum('hqk,hkd->hqd', p.astype(cdt), v,
                   preferred_element_type=jnp.float32)          # (H, T, Dh)

    attn = jnp.concatenate([o[h] for h in range(H)], axis=-1).astype(cdt)   # (T, H*Dh)
    # pre-transposed o-proj weight (D, D) with the FusedLinear per-feature scale folded in.
    x = x + jnp.dot(attn, ow_ref[...], preferred_element_type=jnp.float32)

    # --------------------------------- MLP sublayer ---------------------------------
    # TODO(synk): MLPBlock definition not provided in the reference; assuming
    #             RMSNorm -> Linear -> ReLU^2 -> Linear with residual connection.
    hn = _rmsnorm(x).astype(cdt)
    hmid = jnp.dot(hn, w1_ref[...], preferred_element_type=jnp.float32)
    hmid = jnp.square(jnp.maximum(hmid, 0.0)).astype(cdt)
    x = x + jnp.dot(hmid, w2_ref[...], preferred_element_type=jnp.float32)

    out_ref[0] = x.astype(out_ref.dtype)


# ------------------------------------- wrapper ---------------------------------------
def decoder_layer_pair(x, cos, sin, qkv_wt, o_wt, w1_t, w2_t, *, nheads, head_dim):
    N, T, D = x.shape
    F = head_dim // 2
    M = w1_t.shape[1]
    kernel = functools.partial(_decoder_pair_kernel, nheads=nheads, head_dim=head_dim)
    return pl.pallas_call(
        kernel,
        out_shape=jax.ShapeDtypeStruct((N, T, D), x.dtype),
        grid=(N,),
        in_specs=[
            pl.BlockSpec((1, T, D), lambda n: (n, 0, 0)),     # x
            pl.BlockSpec((1, T, F), lambda n: (n, 0, 0)),     # cos (hoisted rotary)
            pl.BlockSpec((1, T, F), lambda n: (n, 0, 0)),     # sin
            pl.BlockSpec((D, 3 * D), lambda n: (0, 0)),       # qkv_wt (pre-transposed)
            pl.BlockSpec((D, D), lambda n: (0, 0)),           # o_wt   (scale folded)
            pl.BlockSpec((D, M), lambda n: (0, 0)),           # w1_t
            pl.BlockSpec((M, D), lambda n: (0, 0)),           # w2_t
        ],
        out_specs=pl.BlockSpec((1, T, D), lambda n: (n, 0, 0)),
        compiler_params=pltpu.CompilerParams(dimension_semantics=("parallel",)),
    )(x, cos, sin, qkv_wt, o_wt, w1_t, w2_t)


def multirotary_decoder_forward(x, pos, params, *, nheads, head_dim):
    # Hoisted MultiPositionRotary angles: theta_NTF = mean_P(freqs_FP * pos_NTP)
    # — identical for every attention layer, so compute once per forward pass.
    P = pos.shape[-1]
    theta = jnp.einsum('ntp,fp->ntf', pos.astype(jnp.float32), params["freqs"]) / P
    cos = jnp.cos(theta)
    sin = jnp.sin(theta)
    for layer in params["layers"]:
        x = decoder_layer_pair(x, cos, sin, layer["qkv_wt"], layer["o_wt"],
                               layer["w1_t"], layer["w2_t"],
                               nheads=nheads, head_dim=head_dim)
    return x


# --------------------------------- deterministic init --------------------------------
def init_params(key, *, dim, mlp_dim, head_dim, pos_dim, depth, min_freq, max_freq,
                param_dtype=_COMPUTE_DTYPE):
    nfreqs = head_dim // 2
    keys = jax.random.split(key, 1 + 4 * depth)

    # MultiPositionRotary.freqs_FP init (matches torch init semantics).
    freqs = jax.random.normal(keys[0], (nfreqs, pos_dim), jnp.float32)
    freqs = freqs / jnp.sqrt(jnp.mean(freqs ** 2, axis=1, keepdims=True) + 1e-7)
    band = min_freq * (max_freq / min_freq) ** jnp.linspace(0.0, 1.0, nfreqs)
    freqs = freqs * band[:, None]

    layers = []
    k = 1
    for _ in range(depth):
        qkv_w = (jax.random.normal(keys[k], (3 * dim, dim), jnp.float32)
                 / math.sqrt(dim) / 2.0)
        k += 1
        # FusedLinear(dim, dim, scale=True, zero_init=True) would zero the output at init;
        # use small random weights + unit per-feature scale so the kernel path is exercised.
        o_w = jax.random.normal(keys[k], (dim, dim), jnp.float32) / math.sqrt(dim)
        k += 1
        o_scale = jnp.ones((dim,), jnp.float32)
        w1 = jax.random.normal(keys[k], (mlp_dim, dim), jnp.float32) / math.sqrt(dim)
        k += 1
        w2 = jax.random.normal(keys[k], (dim, mlp_dim), jnp.float32) / math.sqrt(mlp_dim)
        k += 1
        layers.append({
            # pre-transposed (in-major), scale-folded, cast to the MXU operand dtype.
            "qkv_wt": qkv_w.T.astype(param_dtype),                     # (D, 3D)
            "o_wt": (o_w * o_scale[:, None]).T.astype(param_dtype),    # (D, D)
            "w1_t": w1.T.astype(param_dtype),                          # (D, M)
            "w2_t": w2.T.astype(param_dtype),                          # (M, D)
        })
    return {"freqs": freqs, "layers": layers}


if __name__ == "__main__":
    # Small shapes consistent with the module.
    N, T = 2, 8
    dim, mlp_dim, head_dim, pos_dim = 32, 64, 16, 4
    depth = 2
    min_freq, max_freq = 0.1, 10.0
    nheads = dim // head_dim

    key = jax.random.PRNGKey(0)
    k_x, k_pos, k_params = jax.random.split(key, 3)

    x = jax.random.normal(k_x, (N, T, dim), jnp.float32)
    pos = jax.random.normal(k_pos, (N, T, pos_dim), jnp.float32)

    params = init_params(k_params, dim=dim, mlp_dim=mlp_dim, head_dim=head_dim,
                         pos_dim=pos_dim, depth=depth,
                         min_freq=min_freq, max_freq=max_freq)

    fwd = jax.jit(functools.partial(multirotary_decoder_forward,
                                    nheads=nheads, head_dim=head_dim))
    out = fwd(x, pos, params)
    out = jax.block_until_ready(out)
    assert out.shape == (N, T, dim) and out.dtype == jnp.float32
    assert bool(jnp.all(jnp.isfinite(out)))
    print("KERNEL_OK")
</pallas_src>

<mosaic_0001>
module attributes {stable_mosaic.version = 11 : i64} {
  func.func @_decoder_pair_kernel(%arg0: i32, %arg1: memref<1x8x32xf32, #tpu.memory_space<vmem>>, %arg2: memref<1x8x8xf32, #tpu.memory_space<vmem>>, %arg3: memref<1x8x8xf32, #tpu.memory_space<vmem>>, %arg4: memref<32x96xbf16, #tpu.memory_space<vmem>>, %arg5: memref<32x32xbf16, #tpu.memory_space<vmem>>, %arg6: memref<32x64xbf16, #tpu.memory_space<vmem>>, %arg7: memref<64x32xbf16, #tpu.memory_space<vmem>>, %arg8: memref<1x8x32xf32, #tpu.memory_space<vmem>>) attributes {dimension_semantics = [#tpu.dimension_semantics<parallel>], iteration_bounds = array<i64: 2>, scalar_prefetch = 0 : i64, scratch_operands = 0 : i64, tpu.core_type = #tpu.core_type<tc>, window_params = [{transform_indices = @transform_0, window_bounds = array<i64: 1, 8, 32>}, {transform_indices = @transform_1, window_bounds = array<i64: 1, 8, 8>}, {transform_indices = @transform_2, window_bounds = array<i64: 1, 8, 8>}, {pipeline_mode = #tpu.pipeline_mode<synchronous>, transform_indices = @transform_3, window_bounds = array<i64: 32, 96>}, {pipeline_mode = #tpu.pipeline_mode<synchronous>, transform_indices = @transform_4, window_bounds = array<i64: 32, 32>}, {pipeline_mode = #tpu.pipeline_mode<synchronous>, transform_indices = @transform_5, window_bounds = array<i64: 32, 64>}, {pipeline_mode = #tpu.pipeline_mode<synchronous>, transform_indices = @transform_6, window_bounds = array<i64: 64, 32>}, {transform_indices = @transform_7, window_bounds = array<i64: 1, 8, 32>}]} {
    %c0 = arith.constant 0 : index
    %c0_0 = arith.constant 0 : index
    %c0_1 = arith.constant 0 : index
    %0 = vector.load %arg1[%c0, %c0_0, %c0_1] : memref<1x8x32xf32, #tpu.memory_space<vmem>>, vector<1x8x32xf32>
    %1 = vector.shape_cast %0 : vector<1x8x32xf32> to vector<8x32xf32>
    %c0_2 = arith.constant 0 : index
    %c0_3 = arith.constant 0 : index
    %c0_4 = arith.constant 0 : index
    %2 = vector.load %arg2[%c0_2, %c0_3, %c0_4] : memref<1x8x8xf32, #tpu.memory_space<vmem>>, vector<1x8x8xf32>
    %3 = vector.shape_cast %2 : vector<1x8x8xf32> to vector<8x8xf32>
    %c0_5 = arith.constant 0 : index
    %c0_6 = arith.constant 0 : index
    %c0_7 = arith.constant 0 : index
    %4 = vector.load %arg3[%c0_5, %c0_6, %c0_7] : memref<1x8x8xf32, #tpu.memory_space<vmem>>, vector<1x8x8xf32>
    %5 = vector.shape_cast %4 : vector<1x8x8xf32> to vector<8x8xf32>
    %6 = arith.mulf %1, %1 : vector<8x32xf32>
    %cst = arith.constant dense<0.000000e+00> : vector<8xf32>
    %7 = vector.multi_reduction <add>, %6, %cst [1] : vector<8x32xf32> to vector<8xf32>
    %8 = vector.shape_cast %7 : vector<8xf32> to vector<8x1xf32>
    %cst_8 = arith.constant 3.200000e+01 : f32
    %9 = vector.broadcast %cst_8 : f32 to vector<8x1xf32>
    %10 = arith.divf %8, %9 : vector<8x1xf32>
    %cst_9 = arith.constant 9.99999997E-7 : f32
    %11 = vector.broadcast %cst_9 : f32 to vector<8x1xf32>
    %12 = arith.addf %10, %11 : vector<8x1xf32>
    %13 = math.rsqrt %12 : vector<8x1xf32>
    %14 = vector.broadcast %13 : vector<8x1xf32> to vector<8x32xf32>
    %15 = arith.mulf %1, %14 : vector<8x32xf32>
    %16 = arith.truncf %15 : vector<8x32xf32> to vector<8x32xbf16>
    %c0_10 = arith.constant 0 : index
    %c0_11 = arith.constant 0 : index
    %17 = vector.load %arg4[%c0_10, %c0_11] : memref<32x96xbf16, #tpu.memory_space<vmem>>, vector<32x96xbf16>
    %cst_12 = arith.constant dense<0.000000e+00> : vector<8x96xf32>
    %18 = tpu.matmul %16, %17, %cst_12 {dimension_numbers = #tpu.dot_dimension_numbers<[1], [0], [0], [1], [0, 0, 1, 1], [], []>} : vector<8x32xbf16>, vector<32x96xbf16>, vector<8x96xf32> -> vector<8x96xf32>
    %19 = vector.extract_strided_slice %18 {offsets = [0, 0], sizes = [8, 16], strides = [1, 1]} : vector<8x96xf32> to vector<8x16xf32>
    %20 = vector.extract_strided_slice %18 {offsets = [0, 16], sizes = [8, 16], strides = [1, 1]} : vector<8x96xf32> to vector<8x16xf32>
    %21 = vector.shape_cast %19 : vector<8x16xf32> to vector<1x8x16xf32>
    %22 = vector.shape_cast %20 : vector<8x16xf32> to vector<1x8x16xf32>
    %23 = tpu.concatenate %21, %22 in 0 : vector<1x8x16xf32>, vector<1x8x16xf32> -> vector<2x8x16xf32>
    %24 = vector.extract_strided_slice %18 {offsets = [0, 32], sizes = [8, 16], strides = [1, 1]} : vector<8x96xf32> to vector<8x16xf32>
    %25 = vector.extract_strided_slice %18 {offsets = [0, 48], sizes = [8, 16], strides = [1, 1]} : vector<8x96xf32> to vector<8x16xf32>
    %26 = vector.shape_cast %24 : vector<8x16xf32> to vector<1x8x16xf32>
    %27 = vector.shape_cast %25 : vector<8x16xf32> to vector<1x8x16xf32>
    %28 = tpu.concatenate %26, %27 in 0 : vector<1x8x16xf32>, vector<1x8x16xf32> -> vector<2x8x16xf32>
    %29 = vector.extract_strided_slice %18 {offsets = [0, 64], sizes = [8, 16], strides = [1, 1]} : vector<8x96xf32> to vector<8x16xf32>
    %30 = vector.extract_strided_slice %18 {offsets = [0, 80], sizes = [8, 16], strides = [1, 1]} : vector<8x96xf32> to vector<8x16xf32>
    %31 = vector.shape_cast %29 : vector<8x16xf32> to vector<1x8x16xf32>
    %32 = vector.shape_cast %30 : vector<8x16xf32> to vector<1x8x16xf32>
    %33 = tpu.concatenate %31, %32 in 0 : vector<1x8x16xf32>, vector<1x8x16xf32> -> vector<2x8x16xf32>
    %34 = arith.mulf %23, %23 : vector<2x8x16xf32>
    %cst_13 = arith.constant dense<0.000000e+00> : vector<2x8xf32>
    %35 = vector.multi_reduction <add>, %34, %cst_13 [2] : vector<2x8x16xf32> to vector<2x8xf32>
    %36 = vector.shape_cast %35 : vector<2x8xf32> to vector<2x8x1xf32>
    %cst_14 = arith.constant 1.600000e+01 : f32
    %37 = vector.broadcast %cst_14 : f32 to vector<2x8x1xf32>
    %38 = arith.divf %36, %37 : vector<2x8x1xf32>
    %cst_15 = arith.constant 9.99999997E-7 : f32
    %39 = vector.broadcast %cst_15 : f32 to vector<2x8x1xf32>
    %40 = arith.addf %38, %39 : vector<2x8x1xf32>
    %41 = math.rsqrt %40 : vector<2x8x1xf32>
    %42 = vector.broadcast %41 : vector<2x8x1xf32> to vector<2x8x16xf32>
    %43 = arith.mulf %23, %42 : vector<2x8x16xf32>
    %44 = vector.extract_strided_slice %43 {offsets = [0, 0, 0], sizes = [2, 8, 8], strides = [1, 1, 1]} : vector<2x8x16xf32> to vector<2x8x8xf32>
    %45 = vector.extract_strided_slice %43 {offsets = [0, 0, 8], sizes = [2, 8, 8], strides = [1, 1, 1]} : vector<2x8x16xf32> to vector<2x8x8xf32>
    %46 = vector.shape_cast %3 : vector<8x8xf32> to vector<1x8x8xf32>
    %47 = vector.shape_cast %5 : vector<8x8xf32> to vector<1x8x8xf32>
    %48 = vector.broadcast %46 : vector<1x8x8xf32> to vector<2x8x8xf32>
    %49 = arith.mulf %44, %48 : vector<2x8x8xf32>
    %50 = vector.broadcast %47 : vector<1x8x8xf32> to vector<2x8x8xf32>
    %51 = arith.mulf %45, %50 : vector<2x8x8xf32>
    %52 = arith.subf %49, %51 : vector<2x8x8xf32>
    %53 = vector.broadcast %47 : vector<1x8x8xf32> to vector<2x8x8xf32>
    %54 = arith.mulf %44, %53 : vector<2x8x8xf32>
    %55 = vector.broadcast %46 : vector<1x8x8xf32> to vector<2x8x8xf32>
    %56 = arith.mulf %45, %55 : vector<2x8x8xf32>
    %57 = arith.addf %54, %56 : vector<2x8x8xf32>
    %58 = tpu.concatenate %52, %57 in 2 : vector<2x8x8xf32>, vector<2x8x8xf32> -> vector<2x8x16xf32>
    %59 = arith.truncf %58 : vector<2x8x16xf32> to vector<2x8x16xbf16>
    %60 = arith.mulf %28, %28 : vector<2x8x16xf32>
    %cst_16 = arith.constant dense<0.000000e+00> : vector<2x8xf32>
    %61 = vector.multi_reduction <add>, %60, %cst_16 [2] : vector<2x8x16xf32> to vector<2x8xf32>
    %62 = vector.shape_cast %61 : vector<2x8xf32> to vector<2x8x1xf32>
    %cst_17 = arith.constant 1.600000e+01 : f32
    %63 = vector.broadcast %cst_17 : f32 to vector<2x8x1xf32>
    %64 = arith.divf %62, %63 : vector<2x8x1xf32>
    %cst_18 = arith.constant 9.99999997E-7 : f32
    %65 = vector.broadcast %cst_18 : f32 to vector<2x8x1xf32>
    %66 = arith.addf %64, %65 : vector<2x8x1xf32>
    %67 = math.rsqrt %66 : vector<2x8x1xf32>
    %68 = vector.broadcast %67 : vector<2x8x1xf32> to vector<2x8x16xf32>
    %69 = arith.mulf %28, %68 : vector<2x8x16xf32>
    %70 = vector.extract_strided_slice %69 {offsets = [0, 0, 0], sizes = [2, 8, 8], strides = [1, 1, 1]} : vector<2x8x16xf32> to vector<2x8x8xf32>
    %71 = vector.extract_strided_slice %69 {offsets = [0, 0, 8], sizes = [2, 8, 8], strides = [1, 1, 1]} : vector<2x8x16xf32> to vector<2x8x8xf32>
    %72 = vector.shape_cast %3 : vector<8x8xf32> to vector<1x8x8xf32>
    %73 = vector.shape_cast %5 : vector<8x8xf32> to vector<1x8x8xf32>
    %74 = vector.broadcast %72 : vector<1x8x8xf32> to vector<2x8x8xf32>
    %75 = arith.mulf %70, %74 : vector<2x8x8xf32>
    %76 = vector.broadcast %73 : vector<1x8x8xf32> to vector<2x8x8xf32>
    %77 = arith.mulf %71, %76 : vector<2x8x8xf32>
    %78 = arith.subf %75, %77 : vector<2x8x8xf32>
    %79 = vector.broadcast %73 : vector<1x8x8xf32> to vector<2x8x8xf32>
    %80 = arith.mulf %70, %79 : vector<2x8x8xf32>
    %81 = vector.broadcast %72 : vector<1x8x8xf32> to vector<2x8x8xf32>
    %82 = arith.mulf %71, %81 : vector<2x8x8xf32>
    %83 = arith.addf %80, %82 : vector<2x8x8xf32>
    %84 = tpu.concatenate %78, %83 in 2 : vector<2x8x8xf32>, vector<2x8x8xf32> -> vector<2x8x16xf32>
    %85 = arith.truncf %84 : vector<2x8x16xf32> to vector<2x8x16xbf16>
    %86 = arith.truncf %33 : vector<2x8x16xf32> to vector<2x8x16xbf16>
    "tpu.trace_start"() <{level = 10 : i32, message = "hqd,hkd->hqk"}> : () -> ()
    %cst_19 = arith.constant dense<0.000000e+00> : vector<2x8x8xf32>
    %87 = tpu.matmul %59, %85, %cst_19 {dimension_numbers = #tpu.dot_dimension_numbers<[2], [2], [1], [1], [0, 0, 0, 1, 1, 1], [0], [0]>} : vector<2x8x16xbf16>, vector<2x8x16xbf16>, vector<2x8x8xf32> -> vector<2x8x8xf32>
    "tpu.trace_stop"() : () -> ()
    %cst_20 = arith.constant 2.500000e-01 : f32
    %88 = vector.broadcast %cst_20 : f32 to vector<2x8x8xf32>
    %89 = arith.mulf %87, %88 : vector<2x8x8xf32>
    %90 = tpu.iota {dimensions = array<i32: 0>} : vector<8x8xi32>
    %91 = tpu.iota {dimensions = array<i32: 1>} : vector<8x8xi32>
    %92 = arith.cmpi sle, %91, %90 : vector<8x8xi32>
    %93 = vector.shape_cast %92 : vector<8x8xi1> to vector<1x8x8xi1>
    %cst_21 = arith.constant -1.000000e+30 : f32
    %94 = vector.shape_cast %93 : vector<1x8x8xi1> to vector<1x8x8xi1>
    %95 = vector.broadcast %94 : vector<1x8x8xi1> to vector<2x8x8xi1>
    %96 = vector.broadcast %cst_21 : f32 to vector<2x8x8xf32>
    %97 = arith.select %95, %89, %96 : vector<2x8x8xi1>, vector<2x8x8xf32>
    %cst_22 = arith.constant dense<0xFF800000> : vector<2x8xf32>
    %98 = vector.multi_reduction <maximumf>, %97, %cst_22 [2] : vector<2x8x8xf32> to vector<2x8xf32>
    %99 = vector.shape_cast %98 : vector<2x8xf32> to vector<2x8x1xf32>
    %100 = vector.broadcast %99 : vector<2x8x1xf32> to vector<2x8x8xf32>
    %101 = arith.subf %97, %100 : vector<2x8x8xf32>
    %102 = math.exp %101 : vector<2x8x8xf32>
    %cst_23 = arith.constant dense<0.000000e+00> : vector<2x8xf32>
    %103 = vector.multi_reduction <add>, %102, %cst_23 [2] : vector<2x8x8xf32> to vector<2x8xf32>
    %104 = vector.shape_cast %103 : vector<2x8xf32> to vector<2x8x1xf32>
    %105 = tpu.reciprocal %104 {approx = true} : vector<2x8x1xf32> -> vector<2x8x1xf32>
    %106 = vector.broadcast %105 : vector<2x8x1xf32> to vector<2x8x8xf32>
    %107 = arith.mulf %102, %106 : vector<2x8x8xf32>
    %108 = arith.truncf %107 : vector<2x8x8xf32> to vector<2x8x8xbf16>
    "tpu.trace_start"() <{level = 10 : i32, message = "hqk,hkd->hqd"}> : () -> ()
    %cst_24 = arith.constant dense<0.000000e+00> : vector<2x8x16xf32>
    %109 = tpu.matmul %108, %86, %cst_24 {dimension_numbers = #tpu.dot_dimension_numbers<[2], [1], [1], [2], [0, 0, 0, 1, 1, 2], [0], [0]>} : vector<2x8x8xbf16>, vector<2x8x16xbf16>, vector<2x8x16xf32> -> vector<2x8x16xf32>
    "tpu.trace_stop"() : () -> ()
    %110 = vector.extract_strided_slice %109 {offsets = [0, 0, 0], sizes = [1, 8, 16], strides = [1, 1, 1]} : vector<2x8x16xf32> to vector<1x8x16xf32>
    %111 = vector.shape_cast %110 : vector<1x8x16xf32> to vector<8x16xf32>
    %112 = vector.extract_strided_slice %109 {offsets = [1, 0, 0], sizes = [1, 8, 16], strides = [1, 1, 1]} : vector<2x8x16xf32> to vector<1x8x16xf32>
    %113 = vector.shape_cast %112 : vector<1x8x16xf32> to vector<8x16xf32>
    %114 = tpu.concatenate %111, %113 in 1 : vector<8x16xf32>, vector<8x16xf32> -> vector<8x32xf32>
    %115 = arith.truncf %114 : vector<8x32xf32> to vector<8x32xbf16>
    %c0_25 = arith.constant 0 : index
    %c0_26 = arith.constant 0 : index
    %116 = vector.load %arg5[%c0_25, %c0_26] : memref<32x32xbf16, #tpu.memory_space<vmem>>, vector<32x32xbf16>
    %cst_27 = arith.constant dense<0.000000e+00> : vector<8x32xf32>
    %117 = tpu.matmul %115, %116, %cst_27 {dimension_numbers = #tpu.dot_dimension_numbers<[1], [0], [0], [1], [0, 0, 1, 1], [], []>} : vector<8x32xbf16>, vector<32x32xbf16>, vector<8x32xf32> -> vector<8x32xf32>
    %118 = arith.addf %1, %117 : vector<8x32xf32>
    %119 = arith.mulf %118, %118 : vector<8x32xf32>
    %cst_28 = arith.constant dense<0.000000e+00> : vector<8xf32>
    %120 = vector.multi_reduction <add>, %119, %cst_28 [1] : vector<8x32xf32> to vector<8xf32>
    %121 = vector.shape_cast %120 : vector<8xf32> to vector<8x1xf32>
    %cst_29 = arith.constant 3.200000e+01 : f32
    %122 = vector.broadcast %cst_29 : f32 to vector<8x1xf32>
    %123 = arith.divf %121, %122 : vector<8x1xf32>
    %cst_30 = arith.constant 9.99999997E-7 : f32
    %124 = vector.broadcast %cst_30 : f32 to vector<8x1xf32>
    %125 = arith.addf %123, %124 : vector<8x1xf32>
    %126 = math.rsqrt %125 : vector<8x1xf32>
    %127 = vector.broadcast %126 : vector<8x1xf32> to vector<8x32xf32>
    %128 = arith.mulf %118, %127 : vector<8x32xf32>
    %129 = arith.truncf %128 : vector<8x32xf32> to vector<8x32xbf16>
    %c0_31 = arith.constant 0 : index
    %c0_32 = arith.constant 0 : index
    %130 = vector.load %arg6[%c0_31, %c0_32] : memref<32x64xbf16, #tpu.memory_space<vmem>>, vector<32x64xbf16>
    %cst_33 = arith.constant dense<0.000000e+00> : vector<8x64xf32>
    %131 = tpu.matmul %129, %130, %cst_33 {dimension_numbers = #tpu.dot_dimension_numbers<[1], [0], [0], [1], [0, 0, 1, 1], [], []>} : vector<8x32xbf16>, vector<32x64xbf16>, vector<8x64xf32> -> vector<8x64xf32>
    %cst_34 = arith.constant 0.000000e+00 : f32
    %132 = vector.broadcast %cst_34 : f32 to vector<8x64xf32>
    %133 = arith.maximumf %131, %132 : vector<8x64xf32>
    %134 = arith.mulf %133, %133 : vector<8x64xf32>
    %135 = arith.truncf %134 : vector<8x64xf32> to vector<8x64xbf16>
    %c0_35 = arith.constant 0 : index
    %c0_36 = arith.constant 0 : index
    %136 = vector.load %arg7[%c0_35, %c0_36] : memref<64x32xbf16, #tpu.memory_space<vmem>>, vector<64x32xbf16>
    %cst_37 = arith.constant dense<0.000000e+00> : vector<8x32xf32>
    %137 = tpu.matmul %135, %136, %cst_37 {dimension_numbers = #tpu.dot_dimension_numbers<[1], [0], [0], [1], [0, 0, 1, 1], [], []>} : vector<8x64xbf16>, vector<64x32xbf16>, vector<8x32xf32> -> vector<8x32xf32>
    %138 = arith.addf %118, %137 : vector<8x32xf32>
    %c0_38 = arith.constant 0 : index
    %c0_39 = arith.constant 0 : index
    %c0_40 = arith.constant 0 : index
    %139 = vector.load %arg8[%c0_38, %c0_39, %c0_40] : memref<1x8x32xf32, #tpu.memory_space<vmem>>, vector<1x8x32xf32>
    %140 = vector.shape_cast %139 : vector<1x8x32xf32> to vector<8x32xf32>
    %141 = vector.shape_cast %138 : vector<8x32xf32> to vector<1x8x32xf32>
    tpu.vector_store %arg8[%c0_38, %c0_39, %c0_40], %141 {strides = array<i32>} : memref<1x8x32xf32, #tpu.memory_space<vmem>>, vector<1x8x32xf32>,
    return
  }
  func.func @transform_0(%arg0: i32) -> (i32, i32, i32) {
    %c0_i32 = arith.constant 0 : i32
    %c0_i32_0 = arith.constant 0 : i32
    %c0_i32_1 = arith.constant 0 : i32
    return %arg0, %c0_i32, %c0_i32_0 : i32, i32, i32
  }
  func.func @transform_1(%arg0: i32) -> (i32, i32, i32) {
    %c0_i32 = arith.constant 0 : i32
    %c0_i32_0 = arith.constant 0 : i32
    %c0_i32_1 = arith.constant 0 : i32
    return %arg0, %c0_i32, %c0_i32_0 : i32, i32, i32
  }
  func.func @transform_2(%arg0: i32) -> (i32, i32, i32) {
    %c0_i32 = arith.constant 0 : i32
    %c0_i32_0 = arith.constant 0 : i32
    %c0_i32_1 = arith.constant 0 : i32
    return %arg0, %c0_i32, %c0_i32_0 : i32, i32, i32
  }
  func.func @transform_3(%arg0: i32) -> (i32, i32) {
    %c0_i32 = arith.constant 0 : i32
    %c0_i32_0 = arith.constant 0 : i32
    %c0_i32_1 = arith.constant 0 : i32
    return %c0_i32, %c0_i32_0 : i32, i32
  }
  func.func @transform_4(%arg0: i32) -> (i32, i32) {
    %c0_i32 = arith.constant 0 : i32
    %c0_i32_0 = arith.constant 0 : i32
    %c0_i32_1 = arith.constant 0 : i32
    return %c0_i32, %c0_i32_0 : i32, i32
  }
  func.func @transform_5(%arg0: i32) -> (i32, i32) {
    %c0_i32 = arith.constant 0 : i32
    %c0_i32_0 = arith.constant 0 : i32
    %c0_i32_1 = arith.constant 0 : i32
    return %c0_i32, %c0_i32_0 : i32, i32
  }
  func.func @transform_6(%arg0: i32) -> (i32, i32) {
    %c0_i32 = arith.constant 0 : i32
    %c0_i32_0 = arith.constant 0 : i32
    %c0_i32_1 = arith.constant 0 : i32
    return %c0_i32, %c0_i32_0 : i32, i32
  }
  func.func @transform_7(%arg0: i32) -> (i32, i32, i32) {
    %c0_i32 = arith.constant 0 : i32
    %c0_i32_0 = arith.constant 0 : i32
    %c0_i32_1 = arith.constant 0 : i32
    return %arg0, %c0_i32, %c0_i32_0 : i32, i32, i32
  }
}

module attributes {stable_mosaic.version = 11 : i64} {
  func.func @_decoder_pair_kernel(%arg0: i32, %arg1: memref<1x8x32xf32, #tpu.memory_space<vmem>>, %arg2: memref<1x8x8xf32, #tpu.memory_space<vmem>>, %arg3: memref<1x8x8xf32, #tpu.memory_space<vmem>>, %arg4: memref<32x96xbf16, #tpu.memory_space<vmem>>, %arg5: memref<32x32xbf16, #tpu.memory_space<vmem>>, %arg6: memref<32x64xbf16, #tpu.memory_space<vmem>>, %arg7: memref<64x32xbf16, #tpu.memory_space<vmem>>, %arg8: memref<1x8x32xf32, #tpu.memory_space<vmem>>) attributes {dimension_semantics = [#tpu.dimension_semantics<parallel>], iteration_bounds = array<i64: 2>, scalar_prefetch = 0 : i64, scratch_operands = 0 : i64, tpu.core_type = #tpu.core_type<tc>, window_params = [{transform_indices = @transform_0, window_bounds = array<i64: 1, 8, 32>}, {transform_indices = @transform_1, window_bounds = array<i64: 1, 8, 8>}, {transform_indices = @transform_2, window_bounds = array<i64: 1, 8, 8>}, {pipeline_mode = #tpu.pipeline_mode<synchronous>, transform_indices = @transform_3, window_bounds = array<i64: 32, 96>}, {pipeline_mode = #tpu.pipeline_mode<synchronous>, transform_indices = @transform_4, window_bounds = array<i64: 32, 32>}, {pipeline_mode = #tpu.pipeline_mode<synchronous>, transform_indices = @transform_5, window_bounds = array<i64: 32, 64>}, {pipeline_mode = #tpu.pipeline_mode<synchronous>, transform_indices = @transform_6, window_bounds = array<i64: 64, 32>}, {transform_indices = @transform_7, window_bounds = array<i64: 1, 8, 32>}]} {
    %c0 = arith.constant 0 : index
    %c0_0 = arith.constant 0 : index
    %c0_1 = arith.constant 0 : index
    %0 = vector.load %arg1[%c0, %c0_0, %c0_1] : memref<1x8x32xf32, #tpu.memory_space<vmem>>, vector<1x8x32xf32>
    %1 = vector.shape_cast %0 : vector<1x8x32xf32> to vector<8x32xf32>
    %c0_2 = arith.constant 0 : index
    %c0_3 = arith.constant 0 : index
    %c0_4 = arith.constant 0 : index
    %2 = vector.load %arg2[%c0_2, %c0_3, %c0_4] : memref<1x8x8xf32, #tpu.memory_space<vmem>>, vector<1x8x8xf32>
    %3 = vector.shape_cast %2 : vector<1x8x8xf32> to vector<8x8xf32>
    %c0_5 = arith.constant 0 : index
    %c0_6 = arith.constant 0 : index
    %c0_7 = arith.constant 0 : index
    %4 = vector.load %arg3[%c0_5, %c0_6, %c0_7] : memref<1x8x8xf32, #tpu.memory_space<vmem>>, vector<1x8x8xf32>
    %5 = vector.shape_cast %4 : vector<1x8x8xf32> to vector<8x8xf32>
    %6 = arith.mulf %1, %1 : vector<8x32xf32>
    %cst = arith.constant dense<0.000000e+00> : vector<8xf32>
    %7 = vector.multi_reduction <add>, %6, %cst [1] : vector<8x32xf32> to vector<8xf32>
    %8 = vector.shape_cast %7 : vector<8xf32> to vector<8x1xf32>
    %cst_8 = arith.constant 3.200000e+01 : f32
    %9 = vector.broadcast %cst_8 : f32 to vector<8x1xf32>
    %10 = arith.divf %8, %9 : vector<8x1xf32>
    %cst_9 = arith.constant 9.99999997E-7 : f32
    %11 = vector.broadcast %cst_9 : f32 to vector<8x1xf32>
    %12 = arith.addf %10, %11 : vector<8x1xf32>
    %13 = math.rsqrt %12 : vector<8x1xf32>
    %14 = vector.broadcast %13 : vector<8x1xf32> to vector<8x32xf32>
    %15 = arith.mulf %1, %14 : vector<8x32xf32>
    %16 = arith.truncf %15 : vector<8x32xf32> to vector<8x32xbf16>
    %c0_10 = arith.constant 0 : index
    %c0_11 = arith.constant 0 : index
    %17 = vector.load %arg4[%c0_10, %c0_11] : memref<32x96xbf16, #tpu.memory_space<vmem>>, vector<32x96xbf16>
    %cst_12 = arith.constant dense<0.000000e+00> : vector<8x96xf32>
    %18 = tpu.matmul %16, %17, %cst_12 {dimension_numbers = #tpu.dot_dimension_numbers<[1], [0], [0], [1], [0, 0, 1, 1], [], []>} : vector<8x32xbf16>, vector<32x96xbf16>, vector<8x96xf32> -> vector<8x96xf32>
    %19 = vector.extract_strided_slice %18 {offsets = [0, 0], sizes = [8, 16], strides = [1, 1]} : vector<8x96xf32> to vector<8x16xf32>
    %20 = vector.extract_strided_slice %18 {offsets = [0, 16], sizes = [8, 16], strides = [1, 1]} : vector<8x96xf32> to vector<8x16xf32>
    %21 = vector.shape_cast %19 : vector<8x16xf32> to vector<1x8x16xf32>
    %22 = vector.shape_cast %20 : vector<8x16xf32> to vector<1x8x16xf32>
    %23 = tpu.concatenate %21, %22 in 0 : vector<1x8x16xf32>, vector<1x8x16xf32> -> vector<2x8x16xf32>
    %24 = vector.extract_strided_slice %18 {offsets = [0, 32], sizes = [8, 16], strides = [1, 1]} : vector<8x96xf32> to vector<8x16xf32>
    %25 = vector.extract_strided_slice %18 {offsets = [0, 48], sizes = [8, 16], strides = [1, 1]} : vector<8x96xf32> to vector<8x16xf32>
    %26 = vector.shape_cast %24 : vector<8x16xf32> to vector<1x8x16xf32>
    %27 = vector.shape_cast %25 : vector<8x16xf32> to vector<1x8x16xf32>
    %28 = tpu.concatenate %26, %27 in 0 : vector<1x8x16xf32>, vector<1x8x16xf32> -> vector<2x8x16xf32>
    %29 = vector.extract_strided_slice %18 {offsets = [0, 64], sizes = [8, 16], strides = [1, 1]} : vector<8x96xf32> to vector<8x16xf32>
    %30 = vector.extract_strided_slice %18 {offsets = [0, 80], sizes = [8, 16], strides = [1, 1]} : vector<8x96xf32> to vector<8x16xf32>
    %31 = vector.shape_cast %29 : vector<8x16xf32> to vector<1x8x16xf32>
    %32 = vector.shape_cast %30 : vector<8x16xf32> to vector<1x8x16xf32>
    %33 = tpu.concatenate %31, %32 in 0 : vector<1x8x16xf32>, vector<1x8x16xf32> -> vector<2x8x16xf32>
    %34 = arith.mulf %23, %23 : vector<2x8x16xf32>
    %cst_13 = arith.constant dense<0.000000e+00> : vector<2x8xf32>
    %35 = vector.multi_reduction <add>, %34, %cst_13 [2] : vector<2x8x16xf32> to vector<2x8xf32>
    %36 = vector.shape_cast %35 : vector<2x8xf32> to vector<2x8x1xf32>
    %cst_14 = arith.constant 1.600000e+01 : f32
    %37 = vector.broadcast %cst_14 : f32 to vector<2x8x1xf32>
    %38 = arith.divf %36, %37 : vector<2x8x1xf32>
    %cst_15 = arith.constant 9.99999997E-7 : f32
    %39 = vector.broadcast %cst_15 : f32 to vector<2x8x1xf32>
    %40 = arith.addf %38, %39 : vector<2x8x1xf32>
    %41 = math.rsqrt %40 : vector<2x8x1xf32>
    %42 = vector.broadcast %41 : vector<2x8x1xf32> to vector<2x8x16xf32>
    %43 = arith.mulf %23, %42 : vector<2x8x16xf32>
    %44 = vector.extract_strided_slice %43 {offsets = [0, 0, 0], sizes = [2, 8, 8], strides = [1, 1, 1]} : vector<2x8x16xf32> to vector<2x8x8xf32>
    %45 = vector.extract_strided_slice %43 {offsets = [0, 0, 8], sizes = [2, 8, 8], strides = [1, 1, 1]} : vector<2x8x16xf32> to vector<2x8x8xf32>
    %46 = vector.shape_cast %3 : vector<8x8xf32> to vector<1x8x8xf32>
    %47 = vector.shape_cast %5 : vector<8x8xf32> to vector<1x8x8xf32>
    %48 = vector.broadcast %46 : vector<1x8x8xf32> to vector<2x8x8xf32>
    %49 = arith.mulf %44, %48 : vector<2x8x8xf32>
    %50 = vector.broadcast %47 : vector<1x8x8xf32> to vector<2x8x8xf32>
    %51 = arith.mulf %45, %50 : vector<2x8x8xf32>
    %52 = arith.subf %49, %51 : vector<2x8x8xf32>
    %53 = vector.broadcast %47 : vector<1x8x8xf32> to vector<2x8x8xf32>
    %54 = arith.mulf %44, %53 : vector<2x8x8xf32>
    %55 = vector.broadcast %46 : vector<1x8x8xf32> to vector<2x8x8xf32>
    %56 = arith.mulf %45, %55 : vector<2x8x8xf32>
    %57 = arith.addf %54, %56 : vector<2x8x8xf32>
    %58 = tpu.concatenate %52, %57 in 2 : vector<2x8x8xf32>, vector<2x8x8xf32> -> vector<2x8x16xf32>
    %59 = arith.truncf %58 : vector<2x8x16xf32> to vector<2x8x16xbf16>
    %60 = arith.mulf %28, %28 : vector<2x8x16xf32>
    %cst_16 = arith.constant dense<0.000000e+00> : vector<2x8xf32>
    %61 = vector.multi_reduction <add>, %60, %cst_16 [2] : vector<2x8x16xf32> to vector<2x8xf32>
    %62 = vector.shape_cast %61 : vector<2x8xf32> to vector<2x8x1xf32>
    %cst_17 = arith.constant 1.600000e+01 : f32
    %63 = vector.broadcast %cst_17 : f32 to vector<2x8x1xf32>
    %64 = arith.divf %62, %63 : vector<2x8x1xf32>
    %cst_18 = arith.constant 9.99999997E-7 : f32
    %65 = vector.broadcast %cst_18 : f32 to vector<2x8x1xf32>
    %66 = arith.addf %64, %65 : vector<2x8x1xf32>
    %67 = math.rsqrt %66 : vector<2x8x1xf32>
    %68 = vector.broadcast %67 : vector<2x8x1xf32> to vector<2x8x16xf32>
    %69 = arith.mulf %28, %68 : vector<2x8x16xf32>
    %70 = vector.extract_strided_slice %69 {offsets = [0, 0, 0], sizes = [2, 8, 8], strides = [1, 1, 1]} : vector<2x8x16xf32> to vector<2x8x8xf32>
    %71 = vector.extract_strided_slice %69 {offsets = [0, 0, 8], sizes = [2, 8, 8], strides = [1, 1, 1]} : vector<2x8x16xf32> to vector<2x8x8xf32>
    %72 = vector.shape_cast %3 : vector<8x8xf32> to vector<1x8x8xf32>
    %73 = vector.shape_cast %5 : vector<8x8xf32> to vector<1x8x8xf32>
    %74 = vector.broadcast %72 : vector<1x8x8xf32> to vector<2x8x8xf32>
    %75 = arith.mulf %70, %74 : vector<2x8x8xf32>
    %76 = vector.broadcast %73 : vector<1x8x8xf32> to vector<2x8x8xf32>
    %77 = arith.mulf %71, %76 : vector<2x8x8xf32>
    %78 = arith.subf %75, %77 : vector<2x8x8xf32>
    %79 = vector.broadcast %73 : vector<1x8x8xf32> to vector<2x8x8xf32>
    %80 = arith.mulf %70, %79 : vector<2x8x8xf32>
    %81 = vector.broadcast %72 : vector<1x8x8xf32> to vector<2x8x8xf32>
    %82 = arith.mulf %71, %81 : vector<2x8x8xf32>
    %83 = arith.addf %80, %82 : vector<2x8x8xf32>
    %84 = tpu.concatenate %78, %83 in 2 : vector<2x8x8xf32>, vector<2x8x8xf32> -> vector<2x8x16xf32>
    %85 = arith.truncf %84 : vector<2x8x16xf32> to vector<2x8x16xbf16>
    %86 = arith.truncf %33 : vector<2x8x16xf32> to vector<2x8x16xbf16>
    "tpu.trace_start"() <{level = 10 : i32, message = "hqd,hkd->hqk"}> : () -> ()
    %cst_19 = arith.constant dense<0.000000e+00> : vector<2x8x8xf32>
    %87 = tpu.matmul %59, %85, %cst_19 {dimension_numbers = #tpu.dot_dimension_numbers<[2], [2], [1], [1], [0, 0, 0, 1, 1, 1], [0], [0]>} : vector<2x8x16xbf16>, vector<2x8x16xbf16>, vector<2x8x8xf32> -> vector<2x8x8xf32>
    "tpu.trace_stop"() : () -> ()
    %cst_20 = arith.constant 2.500000e-01 : f32
    %88 = vector.broadcast %cst_20 : f32 to vector<2x8x8xf32>
    %89 = arith.mulf %87, %88 : vector<2x8x8xf32>
    %90 = tpu.iota {dimensions = array<i32: 0>} : vector<8x8xi32>
    %91 = tpu.iota {dimensions = array<i32: 1>} : vector<8x8xi32>
    %92 = arith.cmpi sle, %91, %90 : vector<8x8xi32>
    %93 = vector.shape_cast %92 : vector<8x8xi1> to vector<1x8x8xi1>
    %cst_21 = arith.constant -1.000000e+30 : f32
    %94 = vector.shape_cast %93 : vector<1x8x8xi1> to vector<1x8x8xi1>
    %95 = vector.broadcast %94 : vector<1x8x8xi1> to vector<2x8x8xi1>
    %96 = vector.broadcast %cst_21 : f32 to vector<2x8x8xf32>
    %97 = arith.select %95, %89, %96 : vector<2x8x8xi1>, vector<2x8x8xf32>
    %cst_22 = arith.constant dense<0xFF800000> : vector<2x8xf32>
    %98 = vector.multi_reduction <maximumf>, %97, %cst_22 [2] : vector<2x8x8xf32> to vector<2x8xf32>
    %99 = vector.shape_cast %98 : vector<2x8xf32> to vector<2x8x1xf32>
    %100 = vector.broadcast %99 : vector<2x8x1xf32> to vector<2x8x8xf32>
    %101 = arith.subf %97, %100 : vector<2x8x8xf32>
    %102 = math.exp %101 : vector<2x8x8xf32>
    %cst_23 = arith.constant dense<0.000000e+00> : vector<2x8xf32>
    %103 = vector.multi_reduction <add>, %102, %cst_23 [2] : vector<2x8x8xf32> to vector<2x8xf32>
    %104 = vector.shape_cast %103 : vector<2x8xf32> to vector<2x8x1xf32>
    %105 = tpu.reciprocal %104 {approx = true} : vector<2x8x1xf32> -> vector<2x8x1xf32>
    %106 = vector.broadcast %105 : vector<2x8x1xf32> to vector<2x8x8xf32>
    %107 = arith.mulf %102, %106 : vector<2x8x8xf32>
    %108 = arith.truncf %107 : vector<2x8x8xf32> to vector<2x8x8xbf16>
    "tpu.trace_start"() <{level = 10 : i32, message = "hqk,hkd->hqd"}> : () -> ()
    %cst_24 = arith.constant dense<0.000000e+00> : vector<2x8x16xf32>
    %109 = tpu.matmul %108, %86, %cst_24 {dimension_numbers = #tpu.dot_dimension_numbers<[2], [1], [1], [2], [0, 0, 0, 1, 1, 2], [0], [0]>} : vector<2x8x8xbf16>, vector<2x8x16xbf16>, vector<2x8x16xf32> -> vector<2x8x16xf32>
    "tpu.trace_stop"() : () -> ()
    %110 = vector.extract_strided_slice %109 {offsets = [0, 0, 0], sizes = [1, 8, 16], strides = [1, 1, 1]} : vector<2x8x16xf32> to vector<1x8x16xf32>
    %111 = vector.shape_cast %110 : vector<1x8x16xf32> to vector<8x16xf32>
    %112 = vector.extract_strided_slice %109 {offsets = [1, 0, 0], sizes = [1, 8, 16], strides = [1, 1, 1]} : vector<2x8x16xf32> to vector<1x8x16xf32>
    %113 = vector.shape_cast %112 : vector<1x8x16xf32> to vector<8x16xf32>
    %114 = tpu.concatenate %111, %113 in 1 : vector<8x16xf32>, vector<8x16xf32> -> vector<8x32xf32>
    %115 = arith.truncf %114 : vector<8x32xf32> to vector<8x32xbf16>
    %c0_25 = arith.constant 0 : index
    %c0_26 = arith.constant 0 : index
    %116 = vector.load %arg5[%c0_25, %c0_26] : memref<32x32xbf16, #tpu.memory_space<vmem>>, vector<32x32xbf16>
    %cst_27 = arith.constant dense<0.000000e+00> : vector<8x32xf32>
    %117 = tpu.matmul %115, %116, %cst_27 {dimension_numbers = #tpu.dot_dimension_numbers<[1], [0], [0], [1], [0, 0, 1, 1], [], []>} : vector<8x32xbf16>, vector<32x32xbf16>, vector<8x32xf32> -> vector<8x32xf32>
    %118 = arith.addf %1, %117 : vector<8x32xf32>
    %119 = arith.mulf %118, %118 : vector<8x32xf32>
    %cst_28 = arith.constant dense<0.000000e+00> : vector<8xf32>
    %120 = vector.multi_reduction <add>, %119, %cst_28 [1] : vector<8x32xf32> to vector<8xf32>
    %121 = vector.shape_cast %120 : vector<8xf32> to vector<8x1xf32>
    %cst_29 = arith.constant 3.200000e+01 : f32
    %122 = vector.broadcast %cst_29 : f32 to vector<8x1xf32>
    %123 = arith.divf %121, %122 : vector<8x1xf32>
    %cst_30 = arith.constant 9.99999997E-7 : f32
    %124 = vector.broadcast %cst_30 : f32 to vector<8x1xf32>
    %125 = arith.addf %123, %124 : vector<8x1xf32>
    %126 = math.rsqrt %125 : vector<8x1xf32>
    %127 = vector.broadcast %126 : vector<8x1xf32> to vector<8x32xf32>
    %128 = arith.mulf %118, %127 : vector<8x32xf32>
    %129 = arith.truncf %128 : vector<8x32xf32> to vector<8x32xbf16>
    %c0_31 = arith.constant 0 : index
    %c0_32 = arith.constant 0 : index
    %130 = vector.load %arg6[%c0_31, %c0_32] : memref<32x64xbf16, #tpu.memory_space<vmem>>, vector<32x64xbf16>
    %cst_33 = arith.constant dense<0.000000e+00> : vector<8x64xf32>
    %131 = tpu.matmul %129, %130, %cst_33 {dimension_numbers = #tpu.dot_dimension_numbers<[1], [0], [0], [1], [0, 0, 1, 1], [], []>} : vector<8x32xbf16>, vector<32x64xbf16>, vector<8x64xf32> -> vector<8x64xf32>
    %cst_34 = arith.constant 0.000000e+00 : f32
    %132 = vector.broadcast %cst_34 : f32 to vector<8x64xf32>
    %133 = arith.maximumf %131, %132 : vector<8x64xf32>
    %134 = arith.mulf %133, %133 : vector<8x64xf32>
    %135 = arith.truncf %134 : vector<8x64xf32> to vector<8x64xbf16>
    %c0_35 = arith.constant 0 : index
    %c0_36 = arith.constant 0 : index
    %136 = vector.load %arg7[%c0_35, %c0_36] : memref<64x32xbf16, #tpu.memory_space<vmem>>, vector<64x32xbf16>
    %cst_37 = arith.constant dense<0.000000e+00> : vector<8x32xf32>
    %137 = tpu.matmul %135, %136, %cst_37 {dimension_numbers = #tpu.dot_dimension_numbers<[1], [0], [0], [1], [0, 0, 1, 1], [], []>} : vector<8x64xbf16>, vector<64x32xbf16>, vector<8x32xf32> -> vector<8x32xf32>
    %138 = arith.addf %118, %137 : vector<8x32xf32>
    %c0_38 = arith.constant 0 : index
    %c0_39 = arith.constant 0 : index
    %c0_40 = arith.constant 0 : index
    %139 = vector.load %arg8[%c0_38, %c0_39, %c0_40] : memref<1x8x32xf32, #tpu.memory_space<vmem>>, vector<1x8x32xf32>
    %140 = vector.shape_cast %139 : vector<1x8x32xf32> to vector<8x32xf32>
    %141 = vector.shape_cast %138 : vector<8x32xf32> to vector<1x8x32xf32>
    tpu.vector_store %arg8[%c0_38, %c0_39, %c0_40], %141 {strides = array<i32>} : memref<1x8x32xf32, #tpu.memory_space<vmem>>, vector<1x8x32xf32>,
    return
  }
  func.func @transform_0(%arg0: i32) -> (i32, i32, i32) {
    %c0_i32 = arith.constant 0 : i32
    %c0_i32_0 = arith.constant 0 : i32
    %c0_i32_1 = arith.constant 0 : i32
    return %arg0, %c0_i32, %c0_i32_0 : i32, i32, i32
  }
  func.func @transform_1(%arg0: i32) -> (i32, i32, i32) {
    %c0_i32 = arith.constant 0 : i32
    %c0_i32_0 = arith.constant 0 : i32
    %c0_i32_1 = arith.constant 0 : i32
    return %arg0, %c0_i32, %c0_i32_0 : i32, i32, i32
  }
  func.func @transform_2(%arg0: i32) -> (i32, i32, i32) {
    %c0_i32 = arith.constant 0 : i32
    %c0_i32_0 = arith.constant 0 : i32
    %c0_i32_1 = arith.constant 0 : i32
    return %arg0, %c0_i32, %c0_i32_0 : i32, i32, i32
  }
  func.func @transform_3(%arg0: i32) -> (i32, i32) {
    %c0_i32 = arith.constant 0 : i32
    %c0_i32_0 = arith.constant 0 : i32
    %c0_i32_1 = arith.constant 0 : i32
    return %c0_i32, %c0_i32_0 : i32, i32
  }
  func.func @transform_4(%arg0: i32) -> (i32, i32) {
    %c0_i32 = arith.constant 0 : i32
    %c0_i32_0 = arith.constant 0 : i32
    %c0_i32_1 = arith.constant 0 : i32
    return %c0_i32, %c0_i32_0 : i32, i32
  }
  func.func @transform_5(%arg0: i32) -> (i32, i32) {
    %c0_i32 = arith.constant 0 : i32
    %c0_i32_0 = arith.constant 0 : i32
    %c0_i32_1 = arith.constant 0 : i32
    return %c0_i32, %c0_i32_0 : i32, i32
  }
  func.func @transform_6(%arg0: i32) -> (i32, i32) {
    %c0_i32 = arith.constant 0 : i32
    %c0_i32_0 = arith.constant 0 : i32
    %c0_i32_1 = arith.constant 0 : i32
    return %c0_i32, %c0_i32_0 : i32, i32
  }
  func.func @transform_7(%arg0: i32) -> (i32, i32, i32) {
    %c0_i32 = arith.constant 0 : i32
    %c0_i32_0 = arith.constant 0 : i32
    %c0_i32_1 = arith.constant 0 : i32
    return %arg0, %c0_i32, %c0_i32_0 : i32, i32, i32
  }
}

</mosaic_0001>

<llo_original>
// kernel: multirotary_decoder_forward.2
$region0: #{multirotary_decoder_forward.2}
  #allocation0 [shape = 'u32[]', space=smem, size = 0x4, offset = 0x4, fixed_abs, tag = 'smem constant byte address 0x4 - core index']
  #allocation1 [shape = 'u32[72,128]{1,0:T(1,128)}', space=vmem, size = 0x9000, scoped, tag = 'internal scratch']
  %s0 = inlined_call_operand.vmem [shape: f32[2,8,32], index: 0, kind: input, shape index: {}]
  %s1 = inlined_call_operand.vmem [shape: f32[2,8,8], index: 1, kind: input, shape index: {}]
  %s2 = inlined_call_operand.vmem [shape: f32[2,8,8], index: 2, kind: input, shape index: {}]
  %s3 = inlined_call_operand.vmem [shape: bf16[32,96], index: 3, kind: input, shape index: {}]
  %s4 = inlined_call_operand.vmem [shape: bf16[32,32], index: 4, kind: input, shape index: {}]
  %s5 = inlined_call_operand.vmem [shape: bf16[32,64], index: 5, kind: input, shape index: {}]
  %s6 = inlined_call_operand.vmem [shape: bf16[64,32], index: 6, kind: input, shape index: {}]
  %s7 = inlined_call_operand.vmem [shape: f32[2,8,32], index: 7, kind: output, shape index: {}]
  %s8 = sld [smem:[#allocation0]]
  $region61: #{multirotary_decoder_forward.2} parent=0
    _
  %s10 = ssub.s32 1, %s8
  %s11 = scalar_select 0, %s10, %s8
  loop: start=0, step=1, limit=4
  $region2: #{multirotary_decoder_forward.2} parent=0 // loop_pre_header
    _
  $region3: #{multirotary_decoder_forward.2} parent=0 // loop_header
    %s13 = sphi 0, %s17
    %p14 = scmp.ge.s32.totalorder %s13, 4
    %s23 = sphi 0, %s25
    %s26 = sphi 0, %s23
    %s27 = sphi 0, %s26
    %s43 = sphi 0, %s27
    %s49 = sphi 0, %s51
    %s52 = sphi 0, %s49
    %s53 = sphi 0, %s52
    %s69 = sphi 0, %s53
    %s75 = sphi 0, %s77
    %s78 = sphi 0, %s75
    %s79 = sphi 0, %s78
    %s95 = sphi 0, %s79
    %s99 = sphi 0, %s99
    %s101 = sphi 0, %s99
    %s102 = sphi 0, %s101
    %s116 = sphi 0, %s102
    %s120 = sphi 0, %s120
    %s122 = sphi 0, %s120
    %s123 = sphi 0, %s122
    %s137 = sphi 0, %s123
    %s141 = sphi 0, %s141
    %s143 = sphi 0, %s141
    %s144 = sphi 0, %s143
    %s158 = sphi 0, %s144
    %s162 = sphi 0, %s162
    %s164 = sphi 0, %s162
    %s165 = sphi 0, %s164
    %s179 = sphi 0, %s165
    %s185 = sphi 0, %s187
    %s188 = sphi 0, %s185
    %s189 = sphi 0, %s188
    %s205 = sphi 0, %s189
  $region4: #{multirotary_decoder_forward.2} parent=0 // loop_header_branch
    %16 = sbr.rel (%p14) target = $region8
  $region5: #{multirotary_decoder_forward.2} parent=0 // loop_body
    %s18 = ssub.s32 %s13, 1
    %s19 = ssub.s32 %s13, 2
    %s20 = sadd.s32 %s13, 1
    %s21 = ssub.s32 %s13, %s20
    %p22 = scmp.eq.s32.totalorder %s21, 0
    %s24 = sadd.s32 %s23, 1
    %s25 = scalar_select %p22, %s23, %s24
    %p28 = pneg %p22
    %p29 = scmp.eq.s32.totalorder %s13, 1
    %p30 = por %p28, %p29
    %p31 = scmp.ne.s32.totalorder %s23, %s26
    %p32 = scmp.eq.s32.totalorder %s13, 0
    %p33 = por %p31, %p32
    %p34 = scmp.ne.s32.totalorder %s23, %s26
    %p35 = scmp.eq.s32.totalorder %s18, 1
    %p36 = por %p34, %p35
    %p37 = scmp.ne.s32.totalorder %s26, %s27
    %p38 = scmp.eq.s32.totalorder %s18, 0
    %p39 = por %p37, %p38
    %p40 = scmp.ne.s32.totalorder %s26, %s27
    %p41 = scmp.eq.s32.totalorder %s19, 1
    %p42 = por %p40, %p41
    %p44 = scmp.ne.s32.totalorder %s27, %s43
    %p45 = scmp.eq.s32.totalorder %s19, 0
    %p46 = por %p44, %p45
    %s47 = ssub.s32 %s13, %s20
    %p48 = scmp.eq.s32.totalorder %s47, 0
    %s50 = sadd.s32 %s49, 1
    %s51 = scalar_select %p48, %s49, %s50
    %p54 = pneg %p48
    %p55 = scmp.eq.s32.totalorder %s13, 1
    %p56 = por %p54, %p55
    %p57 = scmp.ne.s32.totalorder %s49, %s52
    %p58 = scmp.eq.s32.totalorder %s13, 0
    %p59 = por %p57, %p58
    %p60 = scmp.ne.s32.totalorder %s49, %s52
    %p61 = scmp.eq.s32.totalorder %s18, 1
    %p62 = por %p60, %p61
    %p63 = scmp.ne.s32.totalorder %s52, %s53
    %p64 = scmp.eq.s32.totalorder %s18, 0
    %p65 = por %p63, %p64
    %p66 = scmp.ne.s32.totalorder %s52, %s53
    %p67 = scmp.eq.s32.totalorder %s19, 1
    %p68 = por %p66, %p67
    %p70 = scmp.ne.s32.totalorder %s53, %s69
    %p71 = scmp.eq.s32.totalorder %s19, 0
    %p72 = por %p70, %p71
    %s73 = ssub.s32 %s13, %s20
    %p74 = scmp.eq.s32.totalorder %s73, 0
    %s76 = sadd.s32 %s75, 1
    %s77 = scalar_select %p74, %s75, %s76
    %p80 = pneg %p74
    %p81 = scmp.eq.s32.totalorder %s13, 1
    %p82 = por %p80, %p81
    %p83 = scmp.ne.s32.totalorder %s75, %s78
    %p84 = scmp.eq.s32.totalorder %s13, 0
    %p85 = por %p83, %p84
    %p86 = scmp.ne.s32.totalorder %s75, %s78
    %p87 = scmp.eq.s32.totalorder %s18, 1
    %p88 = por %p86, %p87
    %p89 = scmp.ne.s32.totalorder %s78, %s79
    %p90 = scmp.eq.s32.totalorder %s18, 0
    %p91 = por %p89, %p90
    %p92 = scmp.ne.s32.totalorder %s78, %s79
    %p93 = scmp.eq.s32.totalorder %s19, 1
    %p94 = por %p92, %p93
    %p96 = scmp.ne.s32.totalorder %s79, %s95
    %p97 = scmp.eq.s32.totalorder %s19, 0
    %p98 = por %p96, %p97
    %s100 = sadd.s32 %s99, 1
    %p103 = scmp.eq.s32.totalorder %s13, 1
    %p104 = scmp.ne.s32.totalorder %s99, %s101
    %p105 = scmp.eq.s32.totalorder %s13, 0
    %p106 = por %p104, %p105
    %p107 = scmp.ne.s32.totalorder %s99, %s101
    %p108 = scmp.eq.s32.totalorder %s18, 1
    %p109 = por %p107, %p108
    %p110 = scmp.ne.s32.totalorder %s101, %s102
    %p111 = scmp.eq.s32.totalorder %s18, 0
    %p112 = por %p110, %p111
    %p113 = scmp.ne.s32.totalorder %s101, %s102
    %p114 = scmp.eq.s32.totalorder %s19, 1
    %p115 = por %p113, %p114
    %p117 = scmp.ne.s32.totalorder %s102, %s116
    %p118 = scmp.eq.s32.totalorder %s19, 0
    %p119 = por %p117, %p118
    %s121 = sadd.s32 %s120, 1
    %p124 = scmp.eq.s32.totalorder %s13, 1
    %p125 = scmp.ne.s32.totalorder %s120, %s122
    %p126 = scmp.eq.s32.totalorder %s13, 0
    %p127 = por %p125, %p126
    %p128 = scmp.ne.s32.totalorder %s120, %s122
    %p129 = scmp.eq.s32.totalorder %s18, 1
    %p130 = por %p128, %p129
    %p131 = scmp.ne.s32.totalorder %s122, %s123
    %p132 = scmp.eq.s32.totalorder %s18, 0
    %p133 = por %p131, %p132
    %p134 = scmp.ne.s32.totalorder %s122, %s123
    %p135 = scmp.eq.s32.totalorder %s19, 1
    %p136 = por %p134, %p135
    %p138 = scmp.ne.s32.totalorder %s123, %s137
    %p139 = scmp.eq.s32.totalorder %s19, 0
    %p140 = por %p138, %p139
    %s142 = sadd.s32 %s141, 1
    %p145 = scmp.eq.s32.totalorder %s13, 1
    %p146 = scmp.ne.s32.totalorder %s141, %s143
    %p147 = scmp.eq.s32.totalorder %s13, 0
    %p148 = por %p146, %p147
    %p149 = scmp.ne.s32.totalorder %s141, %s143
    %p150 = scmp.eq.s32.totalorder %s18, 1
    %p151 = por %p149, %p150
    %p152 = scmp.ne.s32.totalorder %s143, %s144
    %p153 = scmp.eq.s32.totalorder %s18, 0
    %p154 = por %p152, %p153
    %p155 = scmp.ne.s32.totalorder %s143, %s144
    %p156 = scmp.eq.s32.totalorder %s19, 1
    %p157 = por %p155, %p156
    %p159 = scmp.ne.s32.totalorder %s144, %s158
    %p160 = scmp.eq.s32.totalorder %s19, 0
    %p161 = por %p159, %p160
    %s163 = sadd.s32 %s162, 1
    %p166 = scmp.eq.s32.totalorder %s13, 1
    %p167 = scmp.ne.s32.totalorder %s162, %s164
    %p168 = scmp.eq.s32.totalorder %s13, 0
    %p169 = por %p167, %p168
    %p170 = scmp.ne.s32.totalorder %s162, %s164
    %p171 = scmp.eq.s32.totalorder %s18, 1
    %p172 = por %p170, %p171
    %p173 = scmp.ne.s32.totalorder %s164, %s165
    %p174 = scmp.eq.s32.totalorder %s18, 0
    %p175 = por %p173, %p174
    %p176 = scmp.ne.s32.totalorder %s164, %s165
    %p177 = scmp.eq.s32.totalorder %s19, 1
    %p178 = por %p176, %p177
    %p180 = scmp.ne.s32.totalorder %s165, %s179
    %p181 = scmp.eq.s32.totalorder %s19, 0
    %p182 = por %p180, %p181
    %s183 = ssub.s32 %s13, %s20
    %p184 = scmp.eq.s32.totalorder %s183, 0
    %s186 = sadd.s32 %s185, 1
    %s187 = scalar_select %p184, %s185, %s186
    %p190 = pneg %p184
    %p191 = scmp.eq.s32.totalorder %s13, 1
    %p192 = por %p190, %p191
    %p193 = scmp.ne.s32.totalorder %s185, %s188
    %p194 = scmp.eq.s32.totalorder %s13, 0
    %p195 = por %p193, %p194
    %p196 = scmp.ne.s32.totalorder %s185, %s188
    %p197 = scmp.eq.s32.totalorder %s18, 1
    %p198 = por %p196, %p197
    %p199 = scmp.ne.s32.totalorder %s188, %s189
    %p200 = scmp.eq.s32.totalorder %s18, 0
    %p201 = por %p199, %p200
    %p202 = scmp.ne.s32.totalorder %s188, %s189
    %p203 = scmp.eq.s32.totalorder %s19, 1
    %p204 = por %p202, %p203
    %p206 = scmp.ne.s32.totalorder %s189, %s205
    %p207 = scmp.eq.s32.totalorder %s19, 0
    %p208 = por %p206, %p207
    %p209 = scmp.le.s32.totalorder 1, %s13
    %p210 = scmp.lt.s32.totalorder %s13, 3
    %p211 = pnand %p209, %p210
    %p212 = pneg %p211
    // Predicated region
    $region9: #{multirotary_decoder_forward.2} parent=5 // pred_check
      _
    $region10: #{multirotary_decoder_forward.2} parent=5 // pred_check_branch
      %214 = sbr.rel (%p211) target = $region12
    $region11: #{multirotary_decoder_forward.2} parent=5 // pred_region
      %s215 = ssub.s32 %s13, 1
      // Predicated region
      $region13: #{multirotary_decoder_forward.2} parent=11 // pred_check
        %p216 = pneg %p112
      $region14: #{multirotary_decoder_forward.2} parent=11 // pred_check_branch
        %218 = sbr.rel (%p216) target = $region16
      $region15: #{multirotary_decoder_forward.2} parent=11 // pred_region
        _
      $region16: #{multirotary_decoder_forward.2} parent=11 // pred_fallthru
        _
      // Predicated region
      $region17: #{multirotary_decoder_forward.2} parent=11 // pred_check
        %p219 = pneg %p133
      $region18: #{multirotary_decoder_forward.2} parent=11 // pred_check_branch
        %221 = sbr.rel (%p219) target = $region20
      $region19: #{multirotary_decoder_forward.2} parent=11 // pred_region
        _
      $region20: #{multirotary_decoder_forward.2} parent=11 // pred_fallthru
        _
      // Predicated region
      $region21: #{multirotary_decoder_forward.2} parent=11 // pred_check
        %p222 = pneg %p154
      $region22: #{multirotary_decoder_forward.2} parent=11 // pred_check_branch
        %224 = sbr.rel (%p222) target = $region24
      $region23: #{multirotary_decoder_forward.2} parent=11 // pred_region
        _
      $region24: #{multirotary_decoder_forward.2} parent=11 // pred_fallthru
        _
      // Predicated region
      $region25: #{multirotary_decoder_forward.2} parent=11 // pred_check
        %p225 = pneg %p175
      $region26: #{multirotary_decoder_forward.2} parent=11 // pred_check_branch
        %227 = sbr.rel (%p225) target = $region28
      $region27: #{multirotary_decoder_forward.2} parent=11 // pred_region
        _
      $region28: #{multirotary_decoder_forward.2} parent=11 // pred_fallthru
        _
    $region12: #{multirotary_decoder_forward.2} parent=5 // pred_fallthru
      _
    %p228 = scmp.lt.s32.totalorder %s13, 2
    // Predicated region
    $region29: #{multirotary_decoder_forward.2} parent=5 // pred_check
      %p229 = pneg %p228
    $region30: #{multirotary_decoder_forward.2} parent=5 // pred_check_branch
      %231 = sbr.rel (%p229) target = $region32
    $region31: #{multirotary_decoder_forward.2} parent=5 // pred_region
      // Predicated region
      $region33: #{multirotary_decoder_forward.2} parent=31 // pred_check
        %p232 = pneg %p33
      $region34: #{multirotary_decoder_forward.2} parent=31 // pred_check_branch
        %234 = sbr.rel (%p232) target = $region36
      $region35: #{multirotary_decoder_forward.2} parent=31 // pred_region
        %p235 = scmp.lt.s32.totalorder %s13, 1
        %s236 = scalar_select %p235, %s13, 1
        %s237 = smul.addr %s236, 8
        %s238 = scalar_lea.vmem %s0, %s237
      $region36: #{multirotary_decoder_forward.2} parent=31 // pred_fallthru
        _
      // Predicated region
      $region37: #{multirotary_decoder_forward.2} parent=31 // pred_check
        %p239 = pneg %p59
      $region38: #{multirotary_decoder_forward.2} parent=31 // pred_check_branch
        %241 = sbr.rel (%p239) target = $region40
      $region39: #{multirotary_decoder_forward.2} parent=31 // pred_region
        %p242 = scmp.lt.s32.totalorder %s13, 1
        %s243 = scalar_select %p242, %s13, 1
        %s244 = smul.addr %s243, 8
        %s245 = scalar_lea.vmem %s1, %s244
      $region40: #{multirotary_decoder_forward.2} parent=31 // pred_fallthru
        _
      // Predicated region
      $region41: #{multirotary_decoder_forward.2} parent=31 // pred_check
        %p246 = pneg %p85
      $region42: #{multirotary_decoder_forward.2} parent=31 // pred_check_branch
        %248 = sbr.rel (%p246) target = $region44
      $region43: #{multirotary_decoder_forward.2} parent=31 // pred_region
        %p249 = scmp.lt.s32.totalorder %s13, 1
        %s250 = scalar_select %p249, %s13, 1
        %s251 = smul.addr %s250, 8
        %s252 = scalar_lea.vmem %s2, %s251
      $region44: #{multirotary_decoder_forward.2} parent=31 // pred_fallthru
        _
    $region32: #{multirotary_decoder_forward.2} parent=5 // pred_fallthru
      _
    %p253 = scmp.le.s32.totalorder 1, %s13
    %p254 = scmp.lt.s32.totalorder %s13, 3
    %p255 = pnand %p253, %p254
    %p256 = pneg %p255
    // Predicated region
    $region45: #{multirotary_decoder_forward.2} parent=5 // pred_check
      _
    $region46: #{multirotary_decoder_forward.2} parent=5 // pred_check_branch
      %258 = sbr.rel (%p255) target = $region48
    $region47: #{multirotary_decoder_forward.2} parent=5 // pred_region
      %s259 = ssub.s32 %s13, 1
      %p260 = scmp.lt.s32.totalorder %s18, 1
      %s261 = scalar_select %p260, %s18, 1
      %s262 = smul.addr %s261, 8
      %s263 = scalar_lea.vmem %s0, %s262
      %p264 = pneg %p39
      %p265 = pneg %p36
      %p266 = scmp.lt.s32.totalorder %s18, 1
      %s267 = scalar_select %p266, %s18, 1
      %s268 = smul.addr %s267, 8
      %s269 = scalar_lea.vmem %s1, %s268
      %p270 = pneg %p65
      %p271 = pneg %p62
      %p272 = scmp.lt.s32.totalorder %s18, 1
      %s273 = scalar_select %p272, %s18, 1
      %s274 = smul.addr %s273, 8
      %s275 = scalar_lea.vmem %s2, %s274
      %p276 = pneg %p91
      %p277 = pneg %p88
      %p278 = pneg %p112
      %p279 = pneg %p109
      %p280 = pneg %p133
      %p281 = pneg %p130
      %p282 = pneg %p154
      %p283 = pneg %p151
      %p284 = pneg %p175
      %p285 = pneg %p172
      %p286 = pneg %p201
      %p287 = pneg %p198
      %p288 = scmp.lt.s32.totalorder %s18, 1
      %s289 = scalar_select %p288, %s18, 1
      %s290 = smul.addr %s289, 8
      %s291 = scalar_lea.vmem %s7, %s290
      %p292 = scmp.lt.s32.totalorder %s18, 1
      %s293 = scalar_select %p292, %s18, 1
      %s294 = smul.addr %s293, 8
      %s295 = scalar_lea.vmem %s0, %s294
      %p296 = scmp.lt.s32.totalorder %s18, 1
      %s297 = scalar_select %p296, %s18, 1
      %s298 = smul.addr %s297, 8
      %s299 = scalar_lea.vmem %s1, %s298
      %p300 = scmp.lt.s32.totalorder %s18, 1
      %s301 = scalar_select %p300, %s18, 1
      %s302 = smul.addr %s301, 8
      %s303 = scalar_lea.vmem %s2, %s302
      %p304 = scmp.lt.s32.totalorder %s18, 1
      %s305 = scalar_select %p304, %s18, 1
      %s306 = smul.addr %s305, 8
      %s307 = scalar_lea.vmem %s7, %s306
      %v309 = vld [vmem:[%s295] sm:$0xff]
      %v310 = vld [vmem:[%s299] sm:$0xff]
      %v311 = vld [vmem:[%s303] sm:$0xff]
      %v312 = vmul.f32 %v309, %v309
      %vm313 = vcmask 261120
      %v314 = vsel %vm313, %v312, 0.0
      %315 = vadd.xlane.f32.xlu0 %v314
      %v316 = vpop.xlane.xlu0 %315
      %v317 = vrcp.pop 32.0
      %v318 = vmul.f32 32.0, %v317
      %v319 = vsub.f32 1.0, %v318
      %v320 = vmul.f32 %v317, %v319
      %v321 = vadd.f32 %v317, %v320
      %vm322 = vweird.f32 %v317
      %v323 = vsel %vm322, %v317, %v321
      %v324 = vmul.f32 %v316, %v323
      %v325 = vadd.f32 %v324, 1e-06
      %v326 = vrsqrt.pop %v325
      %v327 = vmul.f32 %v326, %v325
      %v328 = vmul.f32 %v327, %v326
      %v329 = vmul.f32 0.5, %v328
      %v330 = vsub.f32 1.5, %v329
      %v331 = vmul.f32 %v326, %v330
      %vm332 = vweird.f32 %v325
      %vm333 = vweird.f32 %v326
      %vm334 = vmor %vm332, %vm333
      %v335 = vsel %vm334, %v326, %v331
      %v336 = vmul.f32 %v309, %v335
      %v337 = vpack.c.bf16 %v336, %v336
      %v338 = vld [vmem:[%s3] sm:$0xf]
      %v339 = vld [vmem:[%s3 + $0x4] sm:$0xf]
      %v340 = vld [vmem:[%s3 + $0x8] sm:$0xf]
      %v341 = vld [vmem:[%s3 + $0xc] sm:$0xf]
      %v346 = vunpack.c.l.b16 %v338
      %v347 = vunpack.c.l.b16 %v339
      %v348 = vunpack.c.l.b16 %v340
      %v349 = vunpack.c.l.b16 %v341
      %v350 = vpack.c.b16 %v347, %v346
      %v351 = vpack.c.b16 %v349, %v348
      %v355 = vsel %vm313, %v337, 0
      %357 = vmatpush.bf16.msra.mxu0 0
      %358 = vmatpush.bf16.msra.mxu0 0
      %359 = vmatpush.bf16.msra.mxu0 0
      %360 = vmatpush.bf16.msra.mxu0 0
      %361 = vmatpush.bf16.msra.mxu0 0
      %362 = vmatpush.bf16.msra.mxu0 0
      %363 = vmatpush.bf16.msra.mxu0 %v351
      %364 = vmatpush.bf16.msra.mxu0 %v350
      %365 = vmatmul.bf16.gmra.mxu0 %v355
      %v366 = vpop.f32.mrf.mxu0
      %v367 = vadd.f32 0.0, %v366
      %v368 = vpop.f32.mrf.mxu0
      %369 = vdwg.mxu0
      %371 = vrot.lane.b32.xlu0 %v367, 112
      %v372 = vpop.permute.xlu0 %371
      %v374 = vmul.f32 %v367, %v367
      %v375 = vmul.f32 %v372, %v372
      %vm376 = vcmask 130048
      %v377 = vsel %vm376, %v374, 0.0
      %378 = vadd.xlane.f32.xlu0 %v377
      %v379 = vpop.xlane.xlu0 %378
      %v380 = vsel %vm376, %v375, 0.0
      %381 = vadd.xlane.f32.xlu0 %v380
      %v382 = vpop.xlane.xlu0 %381
      %v383 = vrcp.pop 16.0
      %v384 = vmul.f32 16.0, %v383
      %v385 = vsub.f32 1.0, %v384
      %v386 = vmul.f32 %v383, %v385
      %v387 = vadd.f32 %v383, %v386
      %vm388 = vweird.f32 %v383
      %v389 = vsel %vm388, %v383, %v387
      %v390 = vmul.f32 %v379, %v389
      %v391 = vmul.f32 %v382, %v389
      %v392 = vadd.f32 %v390, 1e-06
      %v393 = vadd.f32 %v391, 1e-06
      %v394 = vrsqrt.pop %v392
      %v395 = vmul.f32 %v394, %v392
      %v396 = vmul.f32 %v395, %v394
      %v397 = vmul.f32 0.5, %v396
      %v398 = vsub.f32 1.5, %v397
      %v399 = vmul.f32 %v394, %v398
      %vm400 = vweird.f32 %v392
      %vm401 = vweird.f32 %v394
      %vm402 = vmor %vm400, %vm401
      %v403 = vsel %vm402, %v394, %v399
      %v404 = vrsqrt.pop %v393
      %v405 = vmul.f32 %v404, %v393
      %v406 = vmul.f32 %v405, %v404
      %v407 = vmul.f32 0.5, %v406
      %v408 = vsub.f32 1.5, %v407
      %v409 = vmul.f32 %v404, %v408
      %vm410 = vweird.f32 %v393
      %vm411 = vweird.f32 %v404
      %vm412 = vmor %vm410, %vm411
      %v413 = vsel %vm412, %v404, %v409
      %v414 = vmul.f32 %v367, %v403
      %v415 = vmul.f32 %v372, %v413
      %v416 = vmul.f32 %v414, %v310
      %v417 = vmul.f32 %v415, %v310
      %419 = vrot.lane.b32.xlu0 %v311, 8
      %v420 = vpop.permute.xlu0 %419
      %v422 = vmul.f32 %v414, %v420
      %v423 = vmul.f32 %v415, %v420
      %426 = vrot.lane.b32.xlu0 %v422, 120
      %v427 = vpop.permute.xlu0 %426
      %428 = vrot.lane.b32.xlu0 %v423, 120
      %v429 = vpop.permute.xlu0 %428
      %v432 = vsub.f32 %v416, %v427
      %v433 = vsub.f32 %v417, %v429
      %v434 = vmul.f32 %v414, %v311
      %v435 = vmul.f32 %v415, %v311
      %437 = vrot.lane.b32.xlu0 %v310, 8
      %v438 = vpop.permute.xlu0 %437
      %v440 = vmul.f32 %v414, %v438
      %v441 = vmul.f32 %v415, %v438
      %444 = vrot.lane.b32.xlu0 %v440, 120
      %v445 = vpop.permute.xlu0 %444
      %446 = vrot.lane.b32.xlu0 %v441, 120
      %v447 = vpop.permute.xlu0 %446
      %v450 = vadd.f32 %v434, %v445
      %v451 = vadd.f32 %v435, %v447
      %454 = vrot.lane.b32.xlu0 %v450, 8
      %v455 = vpop.permute.xlu0 %454
      %456 = vrot.lane.b32.xlu0 %v451, 8
      %v457 = vpop.permute.xlu0 %456
      %vm460 = vcmask 64512
      %v461 = vsel %vm460, %v432, %v455
      %v462 = vsel %vm460, %v433, %v457
      %v463 = vpack.c.bf16 %v461, %v461
      %v464 = vpack.c.bf16 %v462, %v462
      %467 = vrot.lane.b32.xlu0 %v374, 96
      %v468 = vpop.permute.xlu0 %467
      %469 = vrot.lane.b32.xlu0 %v375, 96
      %v470 = vpop.permute.xlu0 %469
      %v473 = vsel %vm376, %v468, 0.0
      %474 = vadd.xlane.f32.xlu0 %v473
      %v475 = vpop.xlane.xlu0 %474
      %v476 = vsel %vm376, %v470, 0.0
      %477 = vadd.xlane.f32.xlu0 %v476
      %v478 = vpop.xlane.xlu0 %477
      %v479 = vmul.f32 %v475, %v389
      %v480 = vmul.f32 %v478, %v389
      %v481 = vadd.f32 %v479, 1e-06
      %v482 = vadd.f32 %v480, 1e-06
      %v483 = vrsqrt.pop %v481
      %v484 = vmul.f32 %v483, %v481
      %v485 = vmul.f32 %v484, %v483
      %v486 = vmul.f32 0.5, %v485
      %v487 = vsub.f32 1.5, %v486
      %v488 = vmul.f32 %v483, %v487
      %vm489 = vweird.f32 %v481
      %vm490 = vweird.f32 %v483
      %vm491 = vmor %vm489, %vm490
      %v492 = vsel %vm491, %v483, %v488
      %v493 = vrsqrt.pop %v482
      %v494 = vmul.f32 %v493, %v482
      %v495 = vmul.f32 %v494, %v493
      %v496 = vmul.f32 0.5, %v495
      %v497 = vsub.f32 1.5, %v496
      %v498 = vmul.f32 %v493, %v497
      %vm499 = vweird.f32 %v482
      %vm500 = vweird.f32 %v493
      %vm501 = vmor %vm499, %vm500
      %v502 = vsel %vm501, %v493, %v498
      %v503 = vmul.f32 %v367, %v492
      %v504 = vmul.f32 %v372, %v502
      %505 = vrot.lane.b32.xlu0 %v310, 32
      %v506 = vpop.permute.xlu0 %505
      %v508 = vmul.f32 %v503, %v506
      %v509 = vmul.f32 %v504, %v506
      %510 = vrot.lane.b32.xlu0 %v311, 40
      %v511 = vpop.permute.xlu0 %510
      %v513 = vmul.f32 %v503, %v511
      %v514 = vmul.f32 %v504, %v511
      %517 = vrot.lane.b32.xlu0 %v513, 120
      %v518 = vpop.permute.xlu0 %517
      %519 = vrot.lane.b32.xlu0 %v514, 120
      %v520 = vpop.permute.xlu0 %519
      %v523 = vsub.f32 %v508, %v518
      %v524 = vsub.f32 %v509, %v520
      %525 = vrot.lane.b32.xlu0 %v311, 32
      %v526 = vpop.permute.xlu0 %525
      %v528 = vmul.f32 %v503, %v526
      %v529 = vmul.f32 %v504, %v526
      %530 = vrot.lane.b32.xlu0 %v310, 40
      %v531 = vpop.permute.xlu0 %530
      %v533 = vmul.f32 %v503, %v531
      %v534 = vmul.f32 %v504, %v531
      %537 = vrot.lane.b32.xlu0 %v533, 120
      %v538 = vpop.permute.xlu0 %537
      %539 = vrot.lane.b32.xlu0 %v534, 120
      %v540 = vpop.permute.xlu0 %539
      %v543 = vadd.f32 %v528, %v538
      %v544 = vadd.f32 %v529, %v540
      %547 = vrot.lane.b32.xlu0 %v523, 96
      %v548 = vpop.permute.xlu0 %547
      %549 = vrot.lane.b32.xlu0 %v524, 96
      %v550 = vpop.permute.xlu0 %549
      %555 = vrot.lane.b32.xlu0 %v543, 104
      %v556 = vpop.permute.xlu0 %555
      %557 = vrot.lane.b32.xlu0 %v544, 104
      %v558 = vpop.permute.xlu0 %557
      %v561 = vsel %vm460, %v548, %v556
      %v562 = vsel %vm460, %v550, %v558
      %v563 = vpack.c.bf16 %v561, %v561
      %v564 = vpack.c.bf16 %v562, %v562
      %v565 = vpack.c.bf16 %v367, %v367
      %v566 = vpack.c.bf16 %v372, %v372
      %v568 = vsel %vm376, %v463, 0
      %v571 = vsel %vm376, %v563, 0
      %573 = vmatpush.bf16.xpose.msra.mxu0 0
      %574 = vmatpush.bf16.xpose.msra.mxu0 0
      %575 = vmatpush.bf16.xpose.msra.mxu0 0
      %576 = vmatpush.bf16.xpose.msra.mxu0 0
      %577 = vmatpush.bf16.xpose.msra.mxu0 0
      %578 = vmatpush.bf16.xpose.msra.mxu0 0
      %579 = vmatpush.bf16.xpose.msra.mxu0 0
      %580 = vmatpush.bf16.xpose.msra.mxu0 %v571
      %581 = vmatmul.bf16.gmra.mxu0 %v568
      %v582 = vpop.f32.mrf.mxu0
      %v583 = vadd.f32 0.0, %v582
      %v584 = vpop.f32.mrf.mxu0
      %585 = vdwg.mxu0
      %v587 = vsel %vm376, %v464, 0
      %v590 = vsel %vm376, %v564, 0
      %592 = vmatpush.bf16.xpose.msra.mxu0 0
      %593 = vmatpush.bf16.xpose.msra.mxu0 0
      %594 = vmatpush.bf16.xpose.msra.mxu0 0
      %595 = vmatpush.bf16.xpose.msra.mxu0 0
      %596 = vmatpush.bf16.xpose.msra.mxu0 0
      %597 = vmatpush.bf16.xpose.msra.mxu0 0
      %598 = vmatpush.bf16.xpose.msra.mxu0 0
      %599 = vmatpush.bf16.xpose.msra.mxu0 %v590
      %600 = vmatmul.bf16.gmra.mxu0 %v587
      %v601 = vpop.f32.mrf.mxu0
      %v602 = vadd.f32 0.0, %v601
      %v603 = vpop.f32.mrf.mxu0
      %604 = vdwg.mxu0
      %v605 = vmul.f32 %v583, 0.25
      %v606 = vmul.f32 %v602, 0.25
      %v607 = vlaneseq
      %v608 = vshrl.u32 %v607, 7
      %v609 = vlaneseq
      %v610 = vand.u32 %v609, 127
      %vm611 = vcmp.le.s32.totalorder %v610, %v608
      %v612 = vsel %vm611, 1, 0
      %vm613 = vcmp.eq.s32.totalorder %v612, 1
      %v614 = vsel %vm613, %v605, -1e+30
      %v615 = vsel %vm613, %v606, -1e+30
      %v616 = vsel %vm460, %v614, -inf
      %617 = vmax.xlane.f32.xlu0 %v616
      %v618 = vpop.xlane.xlu0 %617
      %v619 = vsel %vm460, %v615, -inf
      %620 = vmax.xlane.f32.xlu0 %v619
      %v621 = vpop.xlane.xlu0 %620
      %v622 = vsub.f32 %v614, %v618
      %v623 = vsub.f32 %v615, %v621
      %v624 = vmul.f32 %v622, 1.442695
      %v625 = vpow.pop %v624
      %v626 = vmul.f32 %v623, 1.442695
      %v627 = vpow.pop %v626
      %v628 = vsel %vm460, %v625, 0.0
      %629 = vadd.xlane.f32.xlu0 %v628
      %v630 = vpop.xlane.xlu0 %629
      %v631 = vsel %vm460, %v627, 0.0
      %632 = vadd.xlane.f32.xlu0 %v631
      %v633 = vpop.xlane.xlu0 %632
      %v634 = vrcp.pop %v630
      %v635 = vrcp.pop %v633
      %v636 = vmul.f32 %v625, %v634
      %v637 = vmul.f32 %v627, %v635
      %v638 = vpack.c.bf16 %v636, %v636
      %v639 = vpack.c.bf16 %v637, %v637
      %v641 = vunpack.c.l.b16 %v565
      %v642 = vpack.c.b16 %v641, %v641
      %643 = vrot.lane.b32.xlu0 %v642, 64
      %v644 = vpop.permute.xlu0 %643
      %v646 = vsel %vm460, %v638, 0
      %vm648 = vcmask 1043456
      %v650 = vsel %vm648, %v644, 0
      %652 = vmatpush.bf16.msra.mxu0 0
      %653 = vmatpush.bf16.msra.mxu0 0
      %654 = vmatpush.bf16.msra.mxu0 0
      %655 = vmatpush.bf16.msra.mxu0 0
      %656 = vmatpush.bf16.msra.mxu0 0
      %657 = vmatpush.bf16.msra.mxu0 0
      %658 = vmatpush.bf16.msra.mxu0 0
      %659 = vmatpush.bf16.msra.mxu0 %v650
      %660 = vmatmul.bf16.gmra.mxu0 %v646
      %v661 = vpop.f32.mrf.mxu0
      %v662 = vadd.f32 0.0, %v661
      %v663 = vpop.f32.mrf.mxu0
      %664 = vdwg.mxu0
      %v666 = vunpack.c.l.b16 %v566
      %v667 = vpack.c.b16 %v666, %v666
      %668 = vrot.lane.b32.xlu0 %v667, 64
      %v669 = vpop.permute.xlu0 %668
      %v671 = vsel %vm460, %v639, 0
      %v674 = vsel %vm648, %v669, 0
      %676 = vmatpush.bf16.msra.mxu0 0
      %677 = vmatpush.bf16.msra.mxu0 0
      %678 = vmatpush.bf16.msra.mxu0 0
      %679 = vmatpush.bf16.msra.mxu0 0
      %680 = vmatpush.bf16.msra.mxu0 0
      %681 = vmatpush.bf16.msra.mxu0 0
      %682 = vmatpush.bf16.msra.mxu0 0
      %683 = vmatpush.bf16.msra.mxu0 %v674
      %684 = vmatmul.bf16.gmra.mxu0 %v671
      %v685 = vpop.f32.mrf.mxu0
      %v686 = vadd.f32 0.0, %v685
      %v687 = vpop.f32.mrf.mxu0
      %688 = vdwg.mxu0
      %690 = vrot.lane.b32.xlu0 %v686, 16
      %v691 = vpop.permute.xlu0 %690
      %v693 = vsel %vm376, %v662, %v691
      %v694 = vpack.c.bf16 %v693, %v693
      %v695 = vld [vmem:[%s4] sm:$0xf]
      %v696 = vld [vmem:[%s4 + $0x4] sm:$0xf]
      %v697 = vld [vmem:[%s4 + $0x8] sm:$0xf]
      %v698 = vld [vmem:[%s4 + $0xc] sm:$0xf]
      %v703 = vunpack.c.l.b16 %v695
      %v704 = vunpack.c.l.b16 %v696
      %v705 = vunpack.c.l.b16 %v697
      %v706 = vunpack.c.l.b16 %v698
      %v707 = vpack.c.b16 %v704, %v703
      %v708 = vpack.c.b16 %v706, %v705
      %v712 = vsel %vm313, %v694, 0
      %714 = vmatpush.bf16.msra.mxu0 0
      %715 = vmatpush.bf16.msra.mxu0 0
      %716 = vmatpush.bf16.msra.mxu0 0
      %717 = vmatpush.bf16.msra.mxu0 0
      %718 = vmatpush.bf16.msra.mxu0 0
      %719 = vmatpush.bf16.msra.mxu0 0
      %720 = vmatpush.bf16.msra.mxu0 %v708
      %721 = vmatpush.bf16.msra.mxu0 %v707
      %722 = vmatmul.bf16.gmra.mxu0 %v712
      %v723 = vpop.f32.mrf.mxu0
      %v724 = vadd.f32 0.0, %v723
      %v725 = vpop.f32.mrf.mxu0
      %726 = vdwg.mxu0
      %v727 = vadd.f32 %v309, %v724
      %v728 = vmul.f32 %v727, %v727
      %v729 = vsel %vm313, %v728, 0.0
      %730 = vadd.xlane.f32.xlu0 %v729
      %v731 = vpop.xlane.xlu0 %730
      %v732 = vmul.f32 %v731, %v323
      %v733 = vadd.f32 %v732, 1e-06
      %v734 = vrsqrt.pop %v733
      %v735 = vmul.f32 %v734, %v733
      %v736 = vmul.f32 %v735, %v734
      %v737 = vmul.f32 0.5, %v736
      %v738 = vsub.f32 1.5, %v737
      %v739 = vmul.f32 %v734, %v738
      %vm740 = vweird.f32 %v733
      %vm741 = vweird.f32 %v734
      %vm742 = vmor %vm740, %vm741
      %v743 = vsel %vm742, %v734, %v739
      %v744 = vmul.f32 %v727, %v743
      %v745 = vpack.c.bf16 %v744, %v744
      %v746 = vld [vmem:[%s5] sm:$0xf]
      %v747 = vld [vmem:[%s5 + $0x4] sm:$0xf]
      %v748 = vld [vmem:[%s5 + $0x8] sm:$0xf]
      %v749 = vld [vmem:[%s5 + $0xc] sm:$0xf]
      %v754 = vunpack.c.l.b16 %v746
      %v755 = vunpack.c.l.b16 %v747
      %v756 = vunpack.c.l.b16 %v748
      %v757 = vunpack.c.l.b16 %v749
      %v758 = vpack.c.b16 %v755, %v754
      %v759 = vpack.c.b16 %v757, %v756
      %v763 = vsel %vm313, %v745, 0
      %765 = vmatpush.bf16.msra.mxu0 0
      %766 = vmatpush.bf16.msra.mxu0 0
      %767 = vmatpush.bf16.msra.mxu0 0
      %768 = vmatpush.bf16.msra.mxu0 0
      %769 = vmatpush.bf16.msra.mxu0 0
      %770 = vmatpush.bf16.msra.mxu0 0
      %771 = vmatpush.bf16.msra.mxu0 %v759
      %772 = vmatpush.bf16.msra.mxu0 %v758
      %773 = vmatmul.bf16.gmra.mxu0 %v763
      %v774 = vpop.f32.mrf.mxu0
      %v775 = vadd.f32 0.0, %v774
      %v776 = vpop.f32.mrf.mxu0
      %777 = vdwg.mxu0
      %v778 = vmax.f32 %v775, 0.0
      %v779 = vmul.f32 %v778, %v778
      %v780 = vpack.c.bf16 %v779, %v779
      %v781 = vld [vmem:[%s6] sm:$0xf]
      %v782 = vld [vmem:[%s6 + $0x4] sm:$0xf]
      %v783 = vld [vmem:[%s6 + $0x8] sm:$0xf]
      %v784 = vld [vmem:[%s6 + $0xc] sm:$0xf]
      %v785 = vld [vmem:[%s6 + $0x10] sm:$0xf]
      %v786 = vld [vmem:[%s6 + $0x14] sm:$0xf]
      %v787 = vld [vmem:[%s6 + $0x18] sm:$0xf]
      %v788 = vld [vmem:[%s6 + $0x1c] sm:$0xf]
      %v797 = vunpack.c.l.b16 %v781
      %v798 = vunpack.c.l.b16 %v782
      %v799 = vunpack.c.l.b16 %v783
      %v800 = vunpack.c.l.b16 %v784
      %v801 = vunpack.c.l.b16 %v785
      %v802 = vunpack.c.l.b16 %v786
      %v803 = vunpack.c.l.b16 %v787
      %v804 = vunpack.c.l.b16 %v788
      %v805 = vpack.c.b16 %v798, %v797
      %v806 = vpack.c.b16 %v800, %v799
      %v807 = vpack.c.b16 %v802, %v801
      %v808 = vpack.c.b16 %v804, %v803
      %vm813 = vcmask 523264
      %v815 = vsel %vm813, %v780, 0
      %817 = vmatpush.bf16.msra.mxu0 0
      %818 = vmatpush.bf16.msra.mxu0 0
      %819 = vmatpush.bf16.msra.mxu0 0
      %820 = vmatpush.bf16.msra.mxu0 0
      %821 = vmatpush.bf16.msra.mxu0 %v808
      %822 = vmatpush.bf16.msra.mxu0 %v807
      %823 = vmatpush.bf16.msra.mxu0 %v806
      %824 = vmatpush.bf16.msra.mxu0 %v805
      %825 = vmatmul.bf16.gmra.mxu0 %v815
      %v826 = vpop.f32.mrf.mxu0
      %v827 = vadd.f32 0.0, %v826
      %v828 = vpop.f32.mrf.mxu0
      %829 = vdwg.mxu0
      %v830 = vadd.f32 %v727, %v827
      %831 = vst.msk [vmem:[%s307] sm:$0xff] %vm313, %v830
      %p832 = scmp.lt.s32.totalorder %s18, 1
      %s833 = scalar_select %p832, %s18, 1
      %s834 = smul.addr %s833, 8
      %s835 = scalar_lea.vmem %s7, %s834
      // Predicated region
      $region49: #{multirotary_decoder_forward.2} parent=47 // pred_check
        %p836 = pneg %p198
      $region50: #{multirotary_decoder_forward.2} parent=47 // pred_check_branch
        %838 = sbr.rel (%p836) target = $region52
      $region51: #{multirotary_decoder_forward.2} parent=47 // pred_region
        _
      $region52: #{multirotary_decoder_forward.2} parent=47 // pred_fallthru
        _
    $region48: #{multirotary_decoder_forward.2} parent=5 // pred_fallthru
      _
    %p839 = scmp.le.s32.totalorder 2, %s13
    // Predicated region
    $region53: #{multirotary_decoder_forward.2} parent=5 // pred_check
      %p840 = pneg %p839
    $region54: #{multirotary_decoder_forward.2} parent=5 // pred_check_branch
      %842 = sbr.rel (%p840) target = $region56
    $region55: #{multirotary_decoder_forward.2} parent=5 // pred_region
      %s843 = ssub.s32 %s13, 2
      // Predicated region
      $region57: #{multirotary_decoder_forward.2} parent=55 // pred_check
        %p844 = pneg %p204
      $region58: #{multirotary_decoder_forward.2} parent=55 // pred_check_branch
        %846 = sbr.rel (%p844) target = $region60
      $region59: #{multirotary_decoder_forward.2} parent=55 // pred_region
        %p847 = scmp.lt.s32.totalorder %s19, 1
        %s848 = scalar_select %p847, %s19, 1
        %s849 = smul.addr %s848, 8
        %s850 = scalar_lea.vmem %s7, %s849
      $region60: #{multirotary_decoder_forward.2} parent=55 // pred_fallthru
        _
    $region56: #{multirotary_decoder_forward.2} parent=5 // pred_fallthru
      _
  $region6: #{multirotary_decoder_forward.2} parent=0 // loop_footer
    %s17 = sadd.s32 1, %s13
  $region7: #{multirotary_decoder_forward.2} parent=0 // loop_footer_branch
    %12 = sbr.rel target = $region3
  $region8: #{multirotary_decoder_forward.2} parent=0 // loop_exit
    _

// kernel: multirotary_decoder_forward.3
$region0: #{multirotary_decoder_forward.3}
  #allocation0 [shape = 'u32[]', space=smem, size = 0x4, offset = 0x4, fixed_abs, tag = 'smem constant byte address 0x4 - core index']
  #allocation1 [shape = 'u32[72,128]{1,0:T(1,128)}', space=vmem, size = 0x9000, scoped, tag = 'internal scratch']
  %s0 = inlined_call_operand.vmem [shape: f32[2,8,32], index: 0, kind: input, shape index: {}]
  %s1 = inlined_call_operand.vmem [shape: f32[2,8,8], index: 1, kind: input, shape index: {}]
  %s2 = inlined_call_operand.vmem [shape: f32[2,8,8], index: 2, kind: input, shape index: {}]
  %s3 = inlined_call_operand.vmem [shape: bf16[32,96], index: 3, kind: input, shape index: {}]
  %s4 = inlined_call_operand.vmem [shape: bf16[32,32], index: 4, kind: input, shape index: {}]
  %s5 = inlined_call_operand.vmem [shape: bf16[32,64], index: 5, kind: input, shape index: {}]
  %s6 = inlined_call_operand.vmem [shape: bf16[64,32], index: 6, kind: input, shape index: {}]
  %s7 = inlined_call_operand.hbm [shape: f32[2,8,32], index: 7, kind: output, shape index: {}]
  %s8 = sld [smem:[#allocation0]]
  $region61: #{multirotary_decoder_forward.3} parent=0
    _
  %s10 = ssub.s32 1, %s8
  %s11 = scalar_select 0, %s10, %s8
  $region1: #{multirotary_decoder_forward.3} parent=0
    #allocation2 [shape = 'u8[8192]{0}', space=vmem, size = 0x2000, scoped, tag = 'output window, operand 0']
    #allocation3 [shape = 's32[2]{0}', space=sflag, size = 0x8, scoped, tag = 'scoped memory for multirotary_decoder_forward.3']
    %12 = vsyncpa [#allocation3], 0
    %s13 = scalar_lea.sflag [#allocation3], 1
    %14 = vsyncpa %s13, 0
    loop: start=0, step=1, limit=4
    $region2: #{multirotary_decoder_forward.3} parent=1 // loop_pre_header
      _
    $region3: #{multirotary_decoder_forward.3} parent=1 // loop_header
      %s16 = sphi 0, %s20
      %p17 = scmp.ge.s32.totalorder %s16, 4
      %s26 = sphi 0, %s28
      %s29 = sphi 0, %s26
      %s30 = sphi 0, %s29
      %s46 = sphi 0, %s30
      %s52 = sphi 0, %s54
      %s55 = sphi 0, %s52
      %s56 = sphi 0, %s55
      %s72 = sphi 0, %s56
      %s78 = sphi 0, %s80
      %s81 = sphi 0, %s78
      %s82 = sphi 0, %s81
      %s98 = sphi 0, %s82
      %s102 = sphi 0, %s102
      %s104 = sphi 0, %s102
      %s105 = sphi 0, %s104
      %s119 = sphi 0, %s105
      %s123 = sphi 0, %s123
      %s125 = sphi 0, %s123
      %s126 = sphi 0, %s125
      %s140 = sphi 0, %s126
      %s144 = sphi 0, %s144
      %s146 = sphi 0, %s144
      %s147 = sphi 0, %s146
      %s161 = sphi 0, %s147
      %s165 = sphi 0, %s165
      %s167 = sphi 0, %s165
      %s168 = sphi 0, %s167
      %s182 = sphi 0, %s168
      %s188 = sphi 0, %s190
      %s191 = sphi 0, %s188
      %s192 = sphi 0, %s191
      %s208 = sphi 0, %s192
    $region4: #{multirotary_decoder_forward.3} parent=1 // loop_header_branch
      %19 = sbr.rel (%p17) target = $region8
    $region5: #{multirotary_decoder_forward.3} parent=1 // loop_body
      %s21 = ssub.s32 %s16, 1
      %s22 = ssub.s32 %s16, 2
      %s23 = sadd.s32 %s16, 1
      %s24 = ssub.s32 %s16, %s23
      %p25 = scmp.eq.s32.totalorder %s24, 0
      %s27 = sadd.s32 %s26, 1
      %s28 = scalar_select %p25, %s26, %s27
      %p31 = pneg %p25
      %p32 = scmp.eq.s32.totalorder %s16, 1
      %p33 = por %p31, %p32
      %p34 = scmp.ne.s32.totalorder %s26, %s29
      %p35 = scmp.eq.s32.totalorder %s16, 0
      %p36 = por %p34, %p35
      %p37 = scmp.ne.s32.totalorder %s26, %s29
      %p38 = scmp.eq.s32.totalorder %s21, 1
      %p39 = por %p37, %p38
      %p40 = scmp.ne.s32.totalorder %s29, %s30
      %p41 = scmp.eq.s32.totalorder %s21, 0
      %p42 = por %p40, %p41
      %p43 = scmp.ne.s32.totalorder %s29, %s30
      %p44 = scmp.eq.s32.totalorder %s22, 1
      %p45 = por %p43, %p44
      %p47 = scmp.ne.s32.totalorder %s30, %s46
      %p48 = scmp.eq.s32.totalorder %s22, 0
      %p49 = por %p47, %p48
      %s50 = ssub.s32 %s16, %s23
      %p51 = scmp.eq.s32.totalorder %s50, 0
      %s53 = sadd.s32 %s52, 1
      %s54 = scalar_select %p51, %s52, %s53
      %p57 = pneg %p51
      %p58 = scmp.eq.s32.totalorder %s16, 1
      %p59 = por %p57, %p58
      %p60 = scmp.ne.s32.totalorder %s52, %s55
      %p61 = scmp.eq.s32.totalorder %s16, 0
      %p62 = por %p60, %p61
      %p63 = scmp.ne.s32.totalorder %s52, %s55
      %p64 = scmp.eq.s32.totalorder %s21, 1
      %p65 = por %p63, %p64
      %p66 = scmp.ne.s32.totalorder %s55, %s56
      %p67 = scmp.eq.s32.totalorder %s21, 0
      %p68 = por %p66, %p67
      %p69 = scmp.ne.s32.totalorder %s55, %s56
      %p70 = scmp.eq.s32.totalorder %s22, 1
      %p71 = por %p69, %p70
      %p73 = scmp.ne.s32.totalorder %s56, %s72
      %p74 = scmp.eq.s32.totalorder %s22, 0
      %p75 = por %p73, %p74
      %s76 = ssub.s32 %s16, %s23
      %p77 = scmp.eq.s32.totalorder %s76, 0
      %s79 = sadd.s32 %s78, 1
      %s80 = scalar_select %p77, %s78, %s79
      %p83 = pneg %p77
      %p84 = scmp.eq.s32.totalorder %s16, 1
      %p85 = por %p83, %p84
      %p86 = scmp.ne.s32.totalorder %s78, %s81
      %p87 = scmp.eq.s32.totalorder %s16, 0
      %p88 = por %p86, %p87
      %p89 = scmp.ne.s32.totalorder %s78, %s81
      %p90 = scmp.eq.s32.totalorder %s21, 1
      %p91 = por %p89, %p90
      %p92 = scmp.ne.s32.totalorder %s81, %s82
      %p93 = scmp.eq.s32.totalorder %s21, 0
      %p94 = por %p92, %p93
      %p95 = scmp.ne.s32.totalorder %s81, %s82
      %p96 = scmp.eq.s32.totalorder %s22, 1
      %p97 = por %p95, %p96
      %p99 = scmp.ne.s32.totalorder %s82, %s98
      %p100 = scmp.eq.s32.totalorder %s22, 0
      %p101 = por %p99, %p100
      %s103 = sadd.s32 %s102, 1
      %p106 = scmp.eq.s32.totalorder %s16, 1
      %p107 = scmp.ne.s32.totalorder %s102, %s104
      %p108 = scmp.eq.s32.totalorder %s16, 0
      %p109 = por %p107, %p108
      %p110 = scmp.ne.s32.totalorder %s102, %s104
      %p111 = scmp.eq.s32.totalorder %s21, 1
      %p112 = por %p110, %p111
      %p113 = scmp.ne.s32.totalorder %s104, %s105
      %p114 = scmp.eq.s32.totalorder %s21, 0
      %p115 = por %p113, %p114
      %p116 = scmp.ne.s32.totalorder %s104, %s105
      %p117 = scmp.eq.s32.totalorder %s22, 1
      %p118 = por %p116, %p117
      %p120 = scmp.ne.s32.totalorder %s105, %s119
      %p121 = scmp.eq.s32.totalorder %s22, 0
      %p122 = por %p120, %p121
      %s124 = sadd.s32 %s123, 1
      %p127 = scmp.eq.s32.totalorder %s16, 1
      %p128 = scmp.ne.s32.totalorder %s123, %s125
      %p129 = scmp.eq.s32.totalorder %s16, 0
      %p130 = por %p128, %p129
      %p131 = scmp.ne.s32.totalorder %s123, %s125
      %p132 = scmp.eq.s32.totalorder %s21, 1
      %p133 = por %p131, %p132
      %p134 = scmp.ne.s32.totalorder %s125, %s126
      %p135 = scmp.eq.s32.totalorder %s21, 0
      %p136 = por %p134, %p135
      %p137 = scmp.ne.s32.totalorder %s125, %s126
      %p138 = scmp.eq.s32.totalorder %s22, 1
      %p139 = por %p137, %p138
      %p141 = scmp.ne.s32.totalorder %s126, %s140
      %p142 = scmp.eq.s32.totalorder %s22, 0
      %p143 = por %p141, %p142
      %s145 = sadd.s32 %s144, 1
      %p148 = scmp.eq.s32.totalorder %s16, 1
      %p149 = scmp.ne.s32.totalorder %s144, %s146
      %p150 = scmp.eq.s32.totalorder %s16, 0
      %p151 = por %p149, %p150
      %p152 = scmp.ne.s32.totalorder %s144, %s146
      %p153 = scmp.eq.s32.totalorder %s21, 1
      %p154 = por %p152, %p153
      %p155 = scmp.ne.s32.totalorder %s146, %s147
      %p156 = scmp.eq.s32.totalorder %s21, 0
      %p157 = por %p155, %p156
      %p158 = scmp.ne.s32.totalorder %s146, %s147
      %p159 = scmp.eq.s32.totalorder %s22, 1
      %p160 = por %p158, %p159
      %p162 = scmp.ne.s32.totalorder %s147, %s161
      %p163 = scmp.eq.s32.totalorder %s22, 0
      %p164 = por %p162, %p163
      %s166 = sadd.s32 %s165, 1
      %p169 = scmp.eq.s32.totalorder %s16, 1
      %p170 = scmp.ne.s32.totalorder %s165, %s167
      %p171 = scmp.eq.s32.totalorder %s16, 0
      %p172 = por %p170, %p171
      %p173 = scmp.ne.s32.totalorder %s165, %s167
      %p174 = scmp.eq.s32.totalorder %s21, 1
      %p175 = por %p173, %p174
      %p176 = scmp.ne.s32.totalorder %s167, %s168
      %p177 = scmp.eq.s32.totalorder %s21, 0
      %p178 = por %p176, %p177
      %p179 = scmp.ne.s32.totalorder %s167, %s168
      %p180 = scmp.eq.s32.totalorder %s22, 1
      %p181 = por %p179, %p180
      %p183 = scmp.ne.s32.totalorder %s168, %s182
      %p184 = scmp.eq.s32.totalorder %s22, 0
      %p185 = por %p183, %p184
      %s186 = ssub.s32 %s16, %s23
      %p187 = scmp.eq.s32.totalorder %s186, 0
      %s189 = sadd.s32 %s188, 1
      %s190 = scalar_select %p187, %s188, %s189
      %p193 = pneg %p187
      %p194 = scmp.eq.s32.totalorder %s16, 1
      %p195 = por %p193, %p194
      %p196 = scmp.ne.s32.totalorder %s188, %s191
      %p197 = scmp.eq.s32.totalorder %s16, 0
      %p198 = por %p196, %p197
      %p199 = scmp.ne.s32.totalorder %s188, %s191
      %p200 = scmp.eq.s32.totalorder %s21, 1
      %p201 = por %p199, %p200
      %p202 = scmp.ne.s32.totalorder %s191, %s192
      %p203 = scmp.eq.s32.totalorder %s21, 0
      %p204 = por %p202, %p203
      %p205 = scmp.ne.s32.totalorder %s191, %s192
      %p206 = scmp.eq.s32.totalorder %s22, 1
      %p207 = por %p205, %p206
      %p209 = scmp.ne.s32.totalorder %s192, %s208
      %p210 = scmp.eq.s32.totalorder %s22, 0
      %p211 = por %p209, %p210
      %p212 = scmp.le.s32.totalorder 1, %s16
      %p213 = scmp.lt.s32.totalorder %s16, 3
      %p214 = pnand %p212, %p213
      %p215 = pneg %p214
      // Predicated region
      $region9: #{multirotary_decoder_forward.3} parent=5 // pred_check
        _
      $region10: #{multirotary_decoder_forward.3} parent=5 // pred_check_branch
        %217 = sbr.rel (%p214) target = $region12
      $region11: #{multirotary_decoder_forward.3} parent=5 // pred_region
        %s218 = ssub.s32 %s16, 1
        // Predicated region
        $region13: #{multirotary_decoder_forward.3} parent=11 // pred_check
          %p219 = pneg %p115
        $region14: #{multirotary_decoder_forward.3} parent=11 // pred_check_branch
          %221 = sbr.rel (%p219) target = $region16
        $region15: #{multirotary_decoder_forward.3} parent=11 // pred_region
          _
        $region16: #{multirotary_decoder_forward.3} parent=11 // pred_fallthru
          _
        // Predicated region
        $region17: #{multirotary_decoder_forward.3} parent=11 // pred_check
          %p222 = pneg %p136
        $region18: #{multirotary_decoder_forward.3} parent=11 // pred_check_branch
          %224 = sbr.rel (%p222) target = $region20
        $region19: #{multirotary_decoder_forward.3} parent=11 // pred_region
          _
        $region20: #{multirotary_decoder_forward.3} parent=11 // pred_fallthru
          _
        // Predicated region
        $region21: #{multirotary_decoder_forward.3} parent=11 // pred_check
          %p225 = pneg %p157
        $region22: #{multirotary_decoder_forward.3} parent=11 // pred_check_branch
          %227 = sbr.rel (%p225) target = $region24
        $region23: #{multirotary_decoder_forward.3} parent=11 // pred_region
          _
        $region24: #{multirotary_decoder_forward.3} parent=11 // pred_fallthru
          _
        // Predicated region
        $region25: #{multirotary_decoder_forward.3} parent=11 // pred_check
          %p228 = pneg %p178
        $region26: #{multirotary_decoder_forward.3} parent=11 // pred_check_branch
          %230 = sbr.rel (%p228) target = $region28
        $region27: #{multirotary_decoder_forward.3} parent=11 // pred_region
          _
        $region28: #{multirotary_decoder_forward.3} parent=11 // pred_fallthru
          _
      $region12: #{multirotary_decoder_forward.3} parent=5 // pred_fallthru
        _
      %p231 = scmp.lt.s32.totalorder %s16, 2
      // Predicated region
      $region29: #{multirotary_decoder_forward.3} parent=5 // pred_check
        %p232 = pneg %p231
      $region30: #{multirotary_decoder_forward.3} parent=5 // pred_check_branch
        %234 = sbr.rel (%p232) target = $region32
      $region31: #{multirotary_decoder_forward.3} parent=5 // pred_region
        // Predicated region
        $region33: #{multirotary_decoder_forward.3} parent=31 // pred_check
          %p235 = pneg %p36
        $region34: #{multirotary_decoder_forward.3} parent=31 // pred_check_branch
          %237 = sbr.rel (%p235) target = $region36
        $region35: #{multirotary_decoder_forward.3} parent=31 // pred_region
          %p238 = scmp.lt.s32.totalorder %s16, 1
          %s239 = scalar_select %p238, %s16, 1
          %s240 = smul.addr %s239, 8
          %s241 = scalar_lea.vmem %s0, %s240
        $region36: #{multirotary_decoder_forward.3} parent=31 // pred_fallthru
          _
        // Predicated region
        $region37: #{multirotary_decoder_forward.3} parent=31 // pred_check
          %p242 = pneg %p62
        $region38: #{multirotary_decoder_forward.3} parent=31 // pred_check_branch
          %244 = sbr.rel (%p242) target = $region40
        $region39: #{multirotary_decoder_forward.3} parent=31 // pred_region
          %p245 = scmp.lt.s32.totalorder %s16, 1
          %s246 = scalar_select %p245, %s16, 1
          %s247 = smul.addr %s246, 8
          %s248 = scalar_lea.vmem %s1, %s247
        $region40: #{multirotary_decoder_forward.3} parent=31 // pred_fallthru
          _
        // Predicated region
        $region41: #{multirotary_decoder_forward.3} parent=31 // pred_check
          %p249 = pneg %p88
        $region42: #{multirotary_decoder_forward.3} parent=31 // pred_check_branch
          %251 = sbr.rel (%p249) target = $region44
        $region43: #{multirotary_decoder_forward.3} parent=31 // pred_region
          %p252 = scmp.lt.s32.totalorder %s16, 1
          %s253 = scalar_select %p252, %s16, 1
          %s254 = smul.addr %s253, 8
          %s255 = scalar_lea.vmem %s2, %s254
        $region44: #{multirotary_decoder_forward.3} parent=31 // pred_fallthru
          _
      $region32: #{multirotary_decoder_forward.3} parent=5 // pred_fallthru
        _
      %p256 = scmp.le.s32.totalorder 1, %s16
      %p257 = scmp.lt.s32.totalorder %s16, 3
      %p258 = pnand %p256, %p257
      %p259 = pneg %p258
      // Predicated region
      $region45: #{multirotary_decoder_forward.3} parent=5 // pred_check
        _
      $region46: #{multirotary_decoder_forward.3} parent=5 // pred_check_branch
        %261 = sbr.rel (%p258) target = $region48
      $region47: #{multirotary_decoder_forward.3} parent=5 // pred_region
        %s262 = ssub.s32 %s16, 1
        %p263 = scmp.lt.s32.totalorder %s21, 1
        %s264 = scalar_select %p263, %s21, 1
        %s265 = smul.addr %s264, 8
        %s266 = scalar_lea.vmem %s0, %s265
        %p267 = pneg %p42
        %p268 = pneg %p39
        %p269 = scmp.lt.s32.totalorder %s21, 1
        %s270 = scalar_select %p269, %s21, 1
        %s271 = smul.addr %s270, 8
        %s272 = scalar_lea.vmem %s1, %s271
        %p273 = pneg %p68
        %p274 = pneg %p65
        %p275 = scmp.lt.s32.totalorder %s21, 1
        %s276 = scalar_select %p275, %s21, 1
        %s277 = smul.addr %s276, 8
        %s278 = scalar_lea.vmem %s2, %s277
        %p279 = pneg %p94
        %p280 = pneg %p91
        %p281 = pneg %p115
        %p282 = pneg %p112
        %p283 = pneg %p136
        %p284 = pneg %p133
        %p285 = pneg %p157
        %p286 = pneg %p154
        %p287 = pneg %p178
        %p288 = pneg %p175
        %p289 = pneg %p204
        %p290 = pneg %p201
        %s291 = sand.u32 %s191, 1
        %s292 = scalar_lea.sflag [#allocation3], %s291
        %s293 = sand.u32 %s191, 1
        %s294 = smul.addr %s293, 8
        %s295 = scalar_lea.vmem [#allocation2], %s294
        %p296 = scmp.lt.s32.totalorder %s21, 1
        %s297 = scalar_select %p296, %s21, 1
        %s298 = smul.addr %s297, 8
        %s299 = scalar_lea.vmem %s0, %s298
        %p300 = scmp.lt.s32.totalorder %s21, 1
        %s301 = scalar_select %p300, %s21, 1
        %s302 = smul.addr %s301, 8
        %s303 = scalar_lea.vmem %s1, %s302
        %p304 = scmp.lt.s32.totalorder %s21, 1
        %s305 = scalar_select %p304, %s21, 1
        %s306 = smul.addr %s305, 8
        %s307 = scalar_lea.vmem %s2, %s306
        %v309 = vld [vmem:[%s299] sm:$0xff]
        %v310 = vld [vmem:[%s303] sm:$0xff]
        %v311 = vld [vmem:[%s307] sm:$0xff]
        %v312 = vmul.f32 %v309, %v309
        %vm313 = vcmask 261120
        %v314 = vsel %vm313, %v312, 0.0
        %315 = vadd.xlane.f32.xlu0 %v314
        %v316 = vpop.xlane.xlu0 %315
        %v317 = vrcp.pop 32.0
        %v318 = vmul.f32 32.0, %v317
        %v319 = vsub.f32 1.0, %v318
        %v320 = vmul.f32 %v317, %v319
        %v321 = vadd.f32 %v317, %v320
        %vm322 = vweird.f32 %v317
        %v323 = vsel %vm322, %v317, %v321
        %v324 = vmul.f32 %v316, %v323
        %v325 = vadd.f32 %v324, 1e-06
        %v326 = vrsqrt.pop %v325
        %v327 = vmul.f32 %v326, %v325
        %v328 = vmul.f32 %v327, %v326
        %v329 = vmul.f32 0.5, %v328
        %v330 = vsub.f32 1.5, %v329
        %v331 = vmul.f32 %v326, %v330
        %vm332 = vweird.f32 %v325
        %vm333 = vweird.f32 %v326
        %vm334 = vmor %vm332, %vm333
        %v335 = vsel %vm334, %v326, %v331
        %v336 = vmul.f32 %v309, %v335
        %v337 = vpack.c.bf16 %v336, %v336
        %v338 = vld [vmem:[%s3] sm:$0xf]
        %v339 = vld [vmem:[%s3 + $0x4] sm:$0xf]
        %v340 = vld [vmem:[%s3 + $0x8] sm:$0xf]
        %v341 = vld [vmem:[%s3 + $0xc] sm:$0xf]
        %v346 = vunpack.c.l.b16 %v338
        %v347 = vunpack.c.l.b16 %v339
        %v348 = vunpack.c.l.b16 %v340
        %v349 = vunpack.c.l.b16 %v341
        %v350 = vpack.c.b16 %v347, %v346
        %v351 = vpack.c.b16 %v349, %v348
        %v355 = vsel %vm313, %v337, 0
        %357 = vmatpush.bf16.msra.mxu0 0
        %358 = vmatpush.bf16.msra.mxu0 0
        %359 = vmatpush.bf16.msra.mxu0 0
        %360 = vmatpush.bf16.msra.mxu0 0
        %361 = vmatpush.bf16.msra.mxu0 0
        %362 = vmatpush.bf16.msra.mxu0 0
        %363 = vmatpush.bf16.msra.mxu0 %v351
        %364 = vmatpush.bf16.msra.mxu0 %v350
        %365 = vmatmul.bf16.gmra.mxu0 %v355
        %v366 = vpop.f32.mrf.mxu0
        %v367 = vadd.f32 0.0, %v366
        %v368 = vpop.f32.mrf.mxu0
        %369 = vdwg.mxu0
        %371 = vrot.lane.b32.xlu0 %v367, 112
        %v372 = vpop.permute.xlu0 %371
        %v374 = vmul.f32 %v367, %v367
        %v375 = vmul.f32 %v372, %v372
        %vm376 = vcmask 130048
        %v377 = vsel %vm376, %v374, 0.0
        %378 = vadd.xlane.f32.xlu0 %v377
        %v379 = vpop.xlane.xlu0 %378
        %v380 = vsel %vm376, %v375, 0.0
        %381 = vadd.xlane.f32.xlu0 %v380
        %v382 = vpop.xlane.xlu0 %381
        %v383 = vrcp.pop 16.0
        %v384 = vmul.f32 16.0, %v383
        %v385 = vsub.f32 1.0, %v384
        %v386 = vmul.f32 %v383, %v385
        %v387 = vadd.f32 %v383, %v386
        %vm388 = vweird.f32 %v383
        %v389 = vsel %vm388, %v383, %v387
        %v390 = vmul.f32 %v379, %v389
        %v391 = vmul.f32 %v382, %v389
        %v392 = vadd.f32 %v390, 1e-06
        %v393 = vadd.f32 %v391, 1e-06
        %v394 = vrsqrt.pop %v392
        %v395 = vmul.f32 %v394, %v392
        %v396 = vmul.f32 %v395, %v394
        %v397 = vmul.f32 0.5, %v396
        %v398 = vsub.f32 1.5, %v397
        %v399 = vmul.f32 %v394, %v398
        %vm400 = vweird.f32 %v392
        %vm401 = vweird.f32 %v394
        %vm402 = vmor %vm400, %vm401
        %v403 = vsel %vm402, %v394, %v399
        %v404 = vrsqrt.pop %v393
        %v405 = vmul.f32 %v404, %v393
        %v406 = vmul.f32 %v405, %v404
        %v407 = vmul.f32 0.5, %v406
        %v408 = vsub.f32 1.5, %v407
        %v409 = vmul.f32 %v404, %v408
        %vm410 = vweird.f32 %v393
        %vm411 = vweird.f32 %v404
        %vm412 = vmor %vm410, %vm411
        %v413 = vsel %vm412, %v404, %v409
        %v414 = vmul.f32 %v367, %v403
        %v415 = vmul.f32 %v372, %v413
        %v416 = vmul.f32 %v414, %v310
        %v417 = vmul.f32 %v415, %v310
        %419 = vrot.lane.b32.xlu0 %v311, 8
        %v420 = vpop.permute.xlu0 %419
        %v422 = vmul.f32 %v414, %v420
        %v423 = vmul.f32 %v415, %v420
        %426 = vrot.lane.b32.xlu0 %v422, 120
        %v427 = vpop.permute.xlu0 %426
        %428 = vrot.lane.b32.xlu0 %v423, 120
        %v429 = vpop.permute.xlu0 %428
        %v432 = vsub.f32 %v416, %v427
        %v433 = vsub.f32 %v417, %v429
        %v434 = vmul.f32 %v414, %v311
        %v435 = vmul.f32 %v415, %v311
        %437 = vrot.lane.b32.xlu0 %v310, 8
        %v438 = vpop.permute.xlu0 %437
        %v440 = vmul.f32 %v414, %v438
        %v441 = vmul.f32 %v415, %v438
        %444 = vrot.lane.b32.xlu0 %v440, 120
        %v445 = vpop.permute.xlu0 %444
        %446 = vrot.lane.b32.xlu0 %v441, 120
        %v447 = vpop.permute.xlu0 %446
        %v450 = vadd.f32 %v434, %v445
        %v451 = vadd.f32 %v435, %v447
        %454 = vrot.lane.b32.xlu0 %v450, 8
        %v455 = vpop.permute.xlu0 %454
        %456 = vrot.lane.b32.xlu0 %v451, 8
        %v457 = vpop.permute.xlu0 %456
        %vm460 = vcmask 64512
        %v461 = vsel %vm460, %v432, %v455
        %v462 = vsel %vm460, %v433, %v457
        %v463 = vpack.c.bf16 %v461, %v461
        %v464 = vpack.c.bf16 %v462, %v462
        %467 = vrot.lane.b32.xlu0 %v374, 96
        %v468 = vpop.permute.xlu0 %467
        %469 = vrot.lane.b32.xlu0 %v375, 96
        %v470 = vpop.permute.xlu0 %469
        %v473 = vsel %vm376, %v468, 0.0
        %474 = vadd.xlane.f32.xlu0 %v473
        %v475 = vpop.xlane.xlu0 %474
        %v476 = vsel %vm376, %v470, 0.0
        %477 = vadd.xlane.f32.xlu0 %v476
        %v478 = vpop.xlane.xlu0 %477
        %v479 = vmul.f32 %v475, %v389
        %v480 = vmul.f32 %v478, %v389
        %v481 = vadd.f32 %v479, 1e-06
        %v482 = vadd.f32 %v480, 1e-06
        %v483 = vrsqrt.pop %v481
        %v484 = vmul.f32 %v483, %v481
        %v485 = vmul.f32 %v484, %v483
        %v486 = vmul.f32 0.5, %v485
        %v487 = vsub.f32 1.5, %v486
        %v488 = vmul.f32 %v483, %v487
        %vm489 = vweird.f32 %v481
        %vm490 = vweird.f32 %v483
        %vm491 = vmor %vm489, %vm490
        %v492 = vsel %vm491, %v483, %v488
        %v493 = vrsqrt.pop %v482
        %v494 = vmul.f32 %v493, %v482
        %v495 = vmul.f32 %v494, %v493
        %v496 = vmul.f32 0.5, %v495
        %v497 = vsub.f32 1.5, %v496
        %v498 = vmul.f32 %v493, %v497
        %vm499 = vweird.f32 %v482
        %vm500 = vweird.f32 %v493
        %vm501 = vmor %vm499, %vm500
        %v502 = vsel %vm501, %v493, %v498
        %v503 = vmul.f32 %v367, %v492
        %v504 = vmul.f32 %v372, %v502
        %505 = vrot.lane.b32.xlu0 %v310, 32
        %v506 = vpop.permute.xlu0 %505
        %v508 = vmul.f32 %v503, %v506
        %v509 = vmul.f32 %v504, %v506
        %510 = vrot.lane.b32.xlu0 %v311, 40
        %v511 = vpop.permute.xlu0 %510
        %v513 = vmul.f32 %v503, %v511
        %v514 = vmul.f32 %v504, %v511
        %517 = vrot.lane.b32.xlu0 %v513, 120
        %v518 = vpop.permute.xlu0 %517
        %519 = vrot.lane.b32.xlu0 %v514, 120
        %v520 = vpop.permute.xlu0 %519
        %v523 = vsub.f32 %v508, %v518
        %v524 = vsub.f32 %v509, %v520
        %525 = vrot.lane.b32.xlu0 %v311, 32
        %v526 = vpop.permute.xlu0 %525
        %v528 = vmul.f32 %v503, %v526
        %v529 = vmul.f32 %v504, %v526
        %530 = vrot.lane.b32.xlu0 %v310, 40
        %v531 = vpop.permute.xlu0 %530
        %v533 = vmul.f32 %v503, %v531
        %v534 = vmul.f32 %v504, %v531
        %537 = vrot.lane.b32.xlu0 %v533, 120
        %v538 = vpop.permute.xlu0 %537
        %539 = vrot.lane.b32.xlu0 %v534, 120
        %v540 = vpop.permute.xlu0 %539
        %v543 = vadd.f32 %v528, %v538
        %v544 = vadd.f32 %v529, %v540
        %547 = vrot.lane.b32.xlu0 %v523, 96
        %v548 = vpop.permute.xlu0 %547
        %549 = vrot.lane.b32.xlu0 %v524, 96
        %v550 = vpop.permute.xlu0 %549
        %555 = vrot.lane.b32.xlu0 %v543, 104
        %v556 = vpop.permute.xlu0 %555
        %557 = vrot.lane.b32.xlu0 %v544, 104
        %v558 = vpop.permute.xlu0 %557
        %v561 = vsel %vm460, %v548, %v556
        %v562 = vsel %vm460, %v550, %v558
        %v563 = vpack.c.bf16 %v561, %v561
        %v564 = vpack.c.bf16 %v562, %v562
        %v565 = vpack.c.bf16 %v367, %v367
        %v566 = vpack.c.bf16 %v372, %v372
        %v568 = vsel %vm376, %v463, 0
        %v571 = vsel %vm376, %v563, 0
        %573 = vmatpush.bf16.xpose.msra.mxu0 0
        %574 = vmatpush.bf16.xpose.msra.mxu0 0
        %575 = vmatpush.bf16.xpose.msra.mxu0 0
        %576 = vmatpush.bf16.xpose.msra.mxu0 0
        %577 = vmatpush.bf16.xpose.msra.mxu0 0
        %578 = vmatpush.bf16.xpose.msra.mxu0 0
        %579 = vmatpush.bf16.xpose.msra.mxu0 0
        %580 = vmatpush.bf16.xpose.msra.mxu0 %v571
        %581 = vmatmul.bf16.gmra.mxu0 %v568
        %v582 = vpop.f32.mrf.mxu0
        %v583 = vadd.f32 0.0, %v582
        %v584 = vpop.f32.mrf.mxu0
        %585 = vdwg.mxu0
        %v587 = vsel %vm376, %v464, 0
        %v590 = vsel %vm376, %v564, 0
        %592 = vmatpush.bf16.xpose.msra.mxu0 0
        %593 = vmatpush.bf16.xpose.msra.mxu0 0
        %594 = vmatpush.bf16.xpose.msra.mxu0 0
        %595 = vmatpush.bf16.xpose.msra.mxu0 0
        %596 = vmatpush.bf16.xpose.msra.mxu0 0
        %597 = vmatpush.bf16.xpose.msra.mxu0 0
        %598 = vmatpush.bf16.xpose.msra.mxu0 0
        %599 = vmatpush.bf16.xpose.msra.mxu0 %v590
        %600 = vmatmul.bf16.gmra.mxu0 %v587
        %v601 = vpop.f32.mrf.mxu0
        %v602 = vadd.f32 0.0, %v601
        %v603 = vpop.f32.mrf.mxu0
        %604 = vdwg.mxu0
        %v605 = vmul.f32 %v583, 0.25
        %v606 = vmul.f32 %v602, 0.25
        %v607 = vlaneseq
        %v608 = vshrl.u32 %v607, 7
        %v609 = vlaneseq
        %v610 = vand.u32 %v609, 127
        %vm611 = vcmp.le.s32.totalorder %v610, %v608
        %v612 = vsel %vm611, 1, 0
        %vm613 = vcmp.eq.s32.totalorder %v612, 1
        %v614 = vsel %vm613, %v605, -1e+30
        %v615 = vsel %vm613, %v606, -1e+30
        %v616 = vsel %vm460, %v614, -inf
        %617 = vmax.xlane.f32.xlu0 %v616
        %v618 = vpop.xlane.xlu0 %617
        %v619 = vsel %vm460, %v615, -inf
        %620 = vmax.xlane.f32.xlu0 %v619
        %v621 = vpop.xlane.xlu0 %620
        %v622 = vsub.f32 %v614, %v618
        %v623 = vsub.f32 %v615, %v621
        %v624 = vmul.f32 %v622, 1.442695
        %v625 = vpow.pop %v624
        %v626 = vmul.f32 %v623, 1.442695
        %v627 = vpow.pop %v626
        %v628 = vsel %vm460, %v625, 0.0
        %629 = vadd.xlane.f32.xlu0 %v628
        %v630 = vpop.xlane.xlu0 %629
        %v631 = vsel %vm460, %v627, 0.0
        %632 = vadd.xlane.f32.xlu0 %v631
        %v633 = vpop.xlane.xlu0 %632
        %v634 = vrcp.pop %v630
        %v635 = vrcp.pop %v633
        %v636 = vmul.f32 %v625, %v634
        %v637 = vmul.f32 %v627, %v635
        %v638 = vpack.c.bf16 %v636, %v636
        %v639 = vpack.c.bf16 %v637, %v637
        %v641 = vunpack.c.l.b16 %v565
        %v642 = vpack.c.b16 %v641, %v641
        %643 = vrot.lane.b32.xlu0 %v642, 64
        %v644 = vpop.permute.xlu0 %643
        %v646 = vsel %vm460, %v638, 0
        %vm648 = vcmask 1043456
        %v650 = vsel %vm648, %v644, 0
        %652 = vmatpush.bf16.msra.mxu0 0
        %653 = vmatpush.bf16.msra.mxu0 0
        %654 = vmatpush.bf16.msra.mxu0 0
        %655 = vmatpush.bf16.msra.mxu0 0
        %656 = vmatpush.bf16.msra.mxu0 0
        %657 = vmatpush.bf16.msra.mxu0 0
        %658 = vmatpush.bf16.msra.mxu0 0
        %659 = vmatpush.bf16.msra.mxu0 %v650
        %660 = vmatmul.bf16.gmra.mxu0 %v646
        %v661 = vpop.f32.mrf.mxu0
        %v662 = vadd.f32 0.0, %v661
        %v663 = vpop.f32.mrf.mxu0
        %664 = vdwg.mxu0
        %v666 = vunpack.c.l.b16 %v566
        %v667 = vpack.c.b16 %v666, %v666
        %668 = vrot.lane.b32.xlu0 %v667, 64
        %v669 = vpop.permute.xlu0 %668
        %v671 = vsel %vm460, %v639, 0
        %v674 = vsel %vm648, %v669, 0
        %676 = vmatpush.bf16.msra.mxu0 0
        %677 = vmatpush.bf16.msra.mxu0 0
        %678 = vmatpush.bf16.msra.mxu0 0
        %679 = vmatpush.bf16.msra.mxu0 0
        %680 = vmatpush.bf16.msra.mxu0 0
        %681 = vmatpush.bf16.msra.mxu0 0
        %682 = vmatpush.bf16.msra.mxu0 0
        %683 = vmatpush.bf16.msra.mxu0 %v674
        %684 = vmatmul.bf16.gmra.mxu0 %v671
        %v685 = vpop.f32.mrf.mxu0
        %v686 = vadd.f32 0.0, %v685
        %v687 = vpop.f32.mrf.mxu0
        %688 = vdwg.mxu0
        %690 = vrot.lane.b32.xlu0 %v686, 16
        %v691 = vpop.permute.xlu0 %690
        %v693 = vsel %vm376, %v662, %v691
        %v694 = vpack.c.bf16 %v693, %v693
        %v695 = vld [vmem:[%s4] sm:$0xf]
        %v696 = vld [vmem:[%s4 + $0x4] sm:$0xf]
        %v697 = vld [vmem:[%s4 + $0x8] sm:$0xf]
        %v698 = vld [vmem:[%s4 + $0xc] sm:$0xf]
        %v703 = vunpack.c.l.b16 %v695
        %v704 = vunpack.c.l.b16 %v696
        %v705 = vunpack.c.l.b16 %v697
        %v706 = vunpack.c.l.b16 %v698
        %v707 = vpack.c.b16 %v704, %v703
        %v708 = vpack.c.b16 %v706, %v705
        %v712 = vsel %vm313, %v694, 0
        %714 = vmatpush.bf16.msra.mxu0 0
        %715 = vmatpush.bf16.msra.mxu0 0
        %716 = vmatpush.bf16.msra.mxu0 0
        %717 = vmatpush.bf16.msra.mxu0 0
        %718 = vmatpush.bf16.msra.mxu0 0
        %719 = vmatpush.bf16.msra.mxu0 0
        %720 = vmatpush.bf16.msra.mxu0 %v708
        %721 = vmatpush.bf16.msra.mxu0 %v707
        %722 = vmatmul.bf16.gmra.mxu0 %v712
        %v723 = vpop.f32.mrf.mxu0
        %v724 = vadd.f32 0.0, %v723
        %v725 = vpop.f32.mrf.mxu0
        %726 = vdwg.mxu0
        %v727 = vadd.f32 %v309, %v724
        %v728 = vmul.f32 %v727, %v727
        %v729 = vsel %vm313, %v728, 0.0
        %730 = vadd.xlane.f32.xlu0 %v729
        %v731 = vpop.xlane.xlu0 %730
        %v732 = vmul.f32 %v731, %v323
        %v733 = vadd.f32 %v732, 1e-06
        %v734 = vrsqrt.pop %v733
        %v735 = vmul.f32 %v734, %v733
        %v736 = vmul.f32 %v735, %v734
        %v737 = vmul.f32 0.5, %v736
        %v738 = vsub.f32 1.5, %v737
        %v739 = vmul.f32 %v734, %v738
        %vm740 = vweird.f32 %v733
        %vm741 = vweird.f32 %v734
        %vm742 = vmor %vm740, %vm741
        %v743 = vsel %vm742, %v734, %v739
        %v744 = vmul.f32 %v727, %v743
        %v745 = vpack.c.bf16 %v744, %v744
        %v746 = vld [vmem:[%s5] sm:$0xf]
        %v747 = vld [vmem:[%s5 + $0x4] sm:$0xf]
        %v748 = vld [vmem:[%s5 + $0x8] sm:$0xf]
        %v749 = vld [vmem:[%s5 + $0xc] sm:$0xf]
        %v754 = vunpack.c.l.b16 %v746
        %v755 = vunpack.c.l.b16 %v747
        %v756 = vunpack.c.l.b16 %v748
        %v757 = vunpack.c.l.b16 %v749
        %v758 = vpack.c.b16 %v755, %v754
        %v759 = vpack.c.b16 %v757, %v756
        %v763 = vsel %vm313, %v745, 0
        %765 = vmatpush.bf16.msra.mxu0 0
        %766 = vmatpush.bf16.msra.mxu0 0
        %767 = vmatpush.bf16.msra.mxu0 0
        %768 = vmatpush.bf16.msra.mxu0 0
        %769 = vmatpush.bf16.msra.mxu0 0
        %770 = vmatpush.bf16.msra.mxu0 0
        %771 = vmatpush.bf16.msra.mxu0 %v759
        %772 = vmatpush.bf16.msra.mxu0 %v758
        %773 = vmatmul.bf16.gmra.mxu0 %v763
        %v774 = vpop.f32.mrf.mxu0
        %v775 = vadd.f32 0.0, %v774
        %v776 = vpop.f32.mrf.mxu0
        %777 = vdwg.mxu0
        %v778 = vmax.f32 %v775, 0.0
        %v779 = vmul.f32 %v778, %v778
        %v780 = vpack.c.bf16 %v779, %v779
        %v781 = vld [vmem:[%s6] sm:$0xf]
        %v782 = vld [vmem:[%s6 + $0x4] sm:$0xf]
        %v783 = vld [vmem:[%s6 + $0x8] sm:$0xf]
        %v784 = vld [vmem:[%s6 + $0xc] sm:$0xf]
        %v785 = vld [vmem:[%s6 + $0x10] sm:$0xf]
        %v786 = vld [vmem:[%s6 + $0x14] sm:$0xf]
        %v787 = vld [vmem:[%s6 + $0x18] sm:$0xf]
        %v788 = vld [vmem:[%s6 + $0x1c] sm:$0xf]
        %v797 = vunpack.c.l.b16 %v781
        %v798 = vunpack.c.l.b16 %v782
        %v799 = vunpack.c.l.b16 %v783
        %v800 = vunpack.c.l.b16 %v784
        %v801 = vunpack.c.l.b16 %v785
        %v802 = vunpack.c.l.b16 %v786
        %v803 = vunpack.c.l.b16 %v787
        %v804 = vunpack.c.l.b16 %v788
        %v805 = vpack.c.b16 %v798, %v797
        %v806 = vpack.c.b16 %v800, %v799
        %v807 = vpack.c.b16 %v802, %v801
        %v808 = vpack.c.b16 %v804, %v803
        %vm813 = vcmask 523264
        %v815 = vsel %vm813, %v780, 0
        %817 = vmatpush.bf16.msra.mxu0 0
        %818 = vmatpush.bf16.msra.mxu0 0
        %819 = vmatpush.bf16.msra.mxu0 0
        %820 = vmatpush.bf16.msra.mxu0 0
        %821 = vmatpush.bf16.msra.mxu0 %v808
        %822 = vmatpush.bf16.msra.mxu0 %v807
        %823 = vmatpush.bf16.msra.mxu0 %v806
        %824 = vmatpush.bf16.msra.mxu0 %v805
        %825 = vmatmul.bf16.gmra.mxu0 %v815
        %v826 = vpop.f32.mrf.mxu0
        %v827 = vadd.f32 0.0, %v826
        %v828 = vpop.f32.mrf.mxu0
        %829 = vdwg.mxu0
        %v830 = vadd.f32 %v727, %v827
        %831 = vst.msk [vmem:[%s295] sm:$0xff] %vm313, %v830
        %s832 = sand.u32 %s191, 1
        %s833 = scalar_lea.sflag [#allocation3], %s832
        %s834 = sand.u32 %s191, 1
        %s835 = smul.addr %s834, 8
        %s836 = scalar_lea.vmem [#allocation2], %s835
        // Predicated region
        $region49: #{multirotary_decoder_forward.3} parent=47 // pred_check
          %p837 = pneg %p201
        $region50: #{multirotary_decoder_forward.3} parent=47 // pred_check_branch
          %839 = sbr.rel (%p837) target = $region52
        $region51: #{multirotary_decoder_forward.3} parent=47 // pred_region
          %841 = vsyncadd %s833, 0
          %s842 = smul.addr %s21, 8
          %s843 = scalar_lea.hbm %s7, %s842
          %s845 = sshll.u32 %s836, 4
          %s846 = int_to_ptr.vmem [resolvable:$true] %s845
          %s847 = sshll.u32 %s843, 4
          %s848 = int_to_ptr.hbm [resolvable:$true] %s847
          %850 = dma.vmem_to_hbm [thread:$0]  %s846, 128, %s848, %s833
        $region52: #{multirotary_decoder_forward.3} parent=47 // pred_fallthru
          _
      $region48: #{multirotary_decoder_forward.3} parent=5 // pred_fallthru
        _
      %p851 = scmp.le.s32.totalorder 2, %s16
      // Predicated region
      $region53: #{multirotary_decoder_forward.3} parent=5 // pred_check
        %p852 = pneg %p851
      $region54: #{multirotary_decoder_forward.3} parent=5 // pred_check_branch
        %854 = sbr.rel (%p852) target = $region56
      $region55: #{multirotary_decoder_forward.3} parent=5 // pred_region
        %s855 = ssub.s32 %s16, 2
        // Predicated region
        $region57: #{multirotary_decoder_forward.3} parent=55 // pred_check
          %p856 = pneg %p207
        $region58: #{multirotary_decoder_forward.3} parent=55 // pred_check_branch
          %858 = sbr.rel (%p856) target = $region60
        $region59: #{multirotary_decoder_forward.3} parent=55 // pred_region
          %s859 = sand.u32 %s192, 1
          %s860 = scalar_lea.sflag [#allocation3], %s859
          %s861 = sand.u32 %s192, 1
          %s862 = smul.addr %s861, 8
          %s863 = scalar_lea.vmem [#allocation2], %s862
          %865 = dma.done %s860, 128
        $region60: #{multirotary_decoder_forward.3} parent=55 // pred_fallthru
          _
      $region56: #{multirotary_decoder_forward.3} parent=5 // pred_fallthru
        _
    $region6: #{multirotary_decoder_forward.3} parent=1 // loop_footer
      %s20 = sadd.s32 1, %s16
    $region7: #{multirotary_decoder_forward.3} parent=1 // loop_footer_branch
      %15 = sbr.rel target = $region3
    $region8: #{multirotary_decoder_forward.3} parent=1 // loop_exit
      _
    %866 = vsyncpa [#allocation3], 1
    %s867 = scalar_lea.sflag [#allocation3], 1
    %868 = vsyncpa %s867, 1

</llo_original>
